<compile_context>
chip_gen: v7x
topology: tpu7x:2x2x1
jax: 0.10.0
libtpu: 0.0.40
codegen_flags: <defaults>
</compile_context>

<pallas_src>
import functools

import jax
import jax.numpy as jnp
from jax.experimental import pallas as pl
from jax.experimental.pallas import tpu as pltpu


def _round_up(x, m):
    return ((x + m - 1) // m) * m


def conv_bn_mish_kernel(x_ref, w_ref, b_ref, o_ref, *, TH, W, C1p, C2p, K):
    # x_ref: (TH+K-1, Wp, C1p) bf16   one H-stripe (halo rows included), channel-padded, W-padded
    # w_ref: (K*K*C1p, C2p)   bf16    BN-scale-folded conv weights in im2col layout
    # b_ref: (1, C2p)         f32     folded BN bias
    # o_ref: (TH, W, C2p)     f32
    x = x_ref[...]

    # im2col: gather the K*K shifted windows and fuse them into a single MXU contraction.
    cols = []
    for kh in range(K):
        for kw in range(K):
            patch = x[kh:kh + TH, kw:kw + W, :]          # (TH, W, C1p), static slice
            cols.append(patch.reshape(TH * W, C1p))
    patch_mat = jnp.concatenate(cols, axis=-1)           # (TH*W, K*K*C1p), bf16, lane-dense

    acc = jnp.dot(patch_mat, w_ref[...],
                  preferred_element_type=jnp.float32)    # one matmul: (TH*W, C2p) f32

    y = acc + b_ref[...]                                 # fused BN bias (scale already in weights)

    # Mish: y * tanh(softplus(y)) == y * (e^2 + 2e) / (e^2 + 2e + 2) with e = exp(y).
    e = jnp.exp(jnp.minimum(y, 20.0))                    # clamp avoids inf*0 for very large y
    num = e * (e + 2.0)
    t = num * pl.reciprocal(num + 2.0, approx=True)
    o_ref[...] = (y * t).reshape(TH, W, C2p).astype(o_ref.dtype)


def conv_bn_act(x_nchw, weight_oihw, gamma, beta, running_mean, running_var,
                eps=1e-5, k=3, stripe=8):
    N, C1, H, W = x_nchw.shape
    C2 = weight_oihw.shape[0]
    pad = k // 2                                 # autopad (odd k)

    C1p = _round_up(C1, 128)                     # lane-dense channels (in and out)
    C2p = _round_up(C2, 128)
    TH = stripe if (H % stripe == 0 and H >= stripe) else H
    nH = H // TH
    Wp = W + 2 * pad

    # ---- glue (plain JAX): BN folding, layout, halo strips -------------------
    scale = (gamma / jnp.sqrt(running_var + eps)).astype(jnp.float32)      # (C2,)
    bias = (beta - running_mean * scale).astype(jnp.float32)               # (C2,)

    # Fold BN scale into conv weights (exact for inference BN); reshape to im2col layout.
    w = weight_oihw.astype(jnp.float32) * scale[:, None, None, None]       # OIHW
    w = jnp.transpose(w, (2, 3, 1, 0))                                     # HWIO (k,k,C1,C2)
    w = jnp.pad(w, ((0, 0), (0, 0), (0, C1p - C1), (0, C2p - C2)))
    w2 = w.reshape(k * k * C1p, C2p).astype(jnp.bfloat16)                  # (K*K*C1p, C2p)

    bias_p = jnp.pad(bias, (0, C2p - C2)).reshape(1, C2p)

    x = jnp.transpose(x_nchw, (0, 2, 3, 1)).astype(jnp.float32)            # NHWC
    x = jnp.pad(x, ((0, 0), (pad, pad), (pad, pad), (0, C1p - C1)))
    x = x.astype(jnp.bfloat16)                                             # (N, Hp, Wp, C1p)

    # Bake the K-1 halo rows into each H-stripe so every BlockSpec stays block-aligned.
    x_strips = jnp.stack(
        [x[:, i * TH: i * TH + TH + (k - 1)] for i in range(nH)], axis=1)
    x_strips = x_strips.reshape(N * nH, TH + k - 1, Wp, C1p)

    kernel = functools.partial(conv_bn_mish_kernel,
                               TH=TH, W=W, C1p=C1p, C2p=C2p, K=k)

    out = pl.pallas_call(
        kernel,
        out_shape=jax.ShapeDtypeStruct((N, H, W, C2p), jnp.float32),
        grid_spec=pltpu.PrefetchScalarGridSpec(
            num_scalar_prefetch=0,
            grid=(N, nH),
            in_specs=[
                pl.BlockSpec((None, TH + k - 1, Wp, C1p),
                             lambda n, i: (n * nH + i, 0, 0, 0)),
                pl.BlockSpec((k * k * C1p, C2p), lambda n, i: (0, 0)),
                pl.BlockSpec((1, C2p), lambda n, i: (0, 0)),
            ],
            out_specs=pl.BlockSpec((None, TH, W, C2p), lambda n, i: (n, i, 0, 0)),
        ),
        compiler_params=pltpu.CompilerParams(
            dimension_semantics=("parallel", "parallel")),
    )(x_strips, w2, bias_p)

    # Back to PyTorch NCHW convention, drop the channel padding.
    return jnp.transpose(out[..., :C2], (0, 3, 1, 2))


def _reference(x_nchw, weight_oihw, gamma, beta, running_mean, running_var, eps=1e-5):
    y = jax.lax.conv_general_dilated(
        x_nchw.astype(jnp.float32), weight_oihw.astype(jnp.float32),
        window_strides=(1, 1), padding=((1, 1), (1, 1)),
        dimension_numbers=("NCHW", "OIHW", "NCHW"))
    scale = gamma / jnp.sqrt(running_var + eps)
    bias = beta - running_mean * scale
    y = y * scale[None, :, None, None] + bias[None, :, None, None]
    return y * jnp.tanh(jax.nn.softplus(y))


if __name__ == "__main__":
    key = jax.random.PRNGKey(0)
    k_x, k_w, k_g, k_b, k_m, k_v = jax.random.split(key, 6)

    N, C1, C2, H, W = 2, 4, 8, 16, 16
    K = 3

    x = jax.random.normal(k_x, (N, C1, H, W), dtype=jnp.float32)
    # Deterministic synthetic parameters (shapes per nn.Conv2d(c1, c2, 3, bias=False) + BatchNorm2d(c2)).
    weight = jax.random.normal(k_w, (C2, C1, K, K), dtype=jnp.float32) * 0.1
    gamma = 1.0 + 0.1 * jax.random.normal(k_g, (C2,), dtype=jnp.float32)
    beta = 0.1 * jax.random.normal(k_b, (C2,), dtype=jnp.float32)
    running_mean = 0.1 * jax.random.normal(k_m, (C2,), dtype=jnp.float32)
    running_var = jnp.abs(1.0 + 0.1 * jax.random.normal(k_v, (C2,), dtype=jnp.float32))

    out = conv_bn_act(x, weight, gamma, beta, running_mean, running_var)
    out = jax.block_until_ready(out)

    ref = _reference(x, weight, gamma, beta, running_mean, running_var)
    assert out.shape == (N, C2, H, W)
    # bf16 MXU operands + approx reciprocal in Mish -> looser tolerance than a pure-f32 check.
    assert jnp.allclose(out, ref, atol=3e-2, rtol=3e-2), float(jnp.max(jnp.abs(out - ref)))

    print("KERNEL_OK")
</pallas_src>

<mosaic_0001>
module attributes {stable_mosaic.version = 11 : i64} {
  func.func @conv_bn_mish_kernel(%arg0: i32, %arg1: i32, %arg2: memref<1x10x18x128xbf16, #tpu.memory_space<vmem>>, %arg3: memref<1152x128xbf16, #tpu.memory_space<vmem>>, %arg4: memref<1x128xf32, #tpu.memory_space<vmem>>, %arg5: memref<1x8x16x128xf32, #tpu.memory_space<vmem>>) attributes {dimension_semantics = [#tpu.dimension_semantics<parallel>, #tpu.dimension_semantics<parallel>], iteration_bounds = array<i64: 2, 2>, scalar_prefetch = 0 : i64, scratch_operands = 0 : i64, tpu.core_type = #tpu.core_type<tc>, window_params = [{transform_indices = @transform_0, window_bounds = array<i64: 1, 10, 18, 128>}, {pipeline_mode = #tpu.pipeline_mode<synchronous>, transform_indices = @transform_1, window_bounds = array<i64: 1152, 128>}, {pipeline_mode = #tpu.pipeline_mode<synchronous>, transform_indices = @transform_2, window_bounds = array<i64: 1, 128>}, {transform_indices = @transform_3, window_bounds = array<i64: 1, 8, 16, 128>}]} {
    %c0 = arith.constant 0 : index
    %c0_0 = arith.constant 0 : index
    %c0_1 = arith.constant 0 : index
    %c0_2 = arith.constant 0 : index
    %0 = vector.load %arg2[%c0, %c0_0, %c0_1, %c0_2] : memref<1x10x18x128xbf16, #tpu.memory_space<vmem>>, vector<1x10x18x128xbf16>
    %1 = vector.shape_cast %0 : vector<1x10x18x128xbf16> to vector<10x18x128xbf16>
    %2 = vector.extract_strided_slice %1 {offsets = [0, 0, 0], sizes = [8, 16, 128], strides = [1, 1, 1]} : vector<10x18x128xbf16> to vector<8x16x128xbf16>
    %3 = vector.shape_cast %2 : vector<8x16x128xbf16> to vector<128x128xbf16>
    %4 = vector.extract_strided_slice %1 {offsets = [0, 1, 0], sizes = [8, 16, 128], strides = [1, 1, 1]} : vector<10x18x128xbf16> to vector<8x16x128xbf16>
    %5 = vector.shape_cast %4 : vector<8x16x128xbf16> to vector<128x128xbf16>
    %6 = vector.extract_strided_slice %1 {offsets = [0, 2, 0], sizes = [8, 16, 128], strides = [1, 1, 1]} : vector<10x18x128xbf16> to vector<8x16x128xbf16>
    %7 = vector.shape_cast %6 : vector<8x16x128xbf16> to vector<128x128xbf16>
    %8 = vector.extract_strided_slice %1 {offsets = [1, 0, 0], sizes = [8, 16, 128], strides = [1, 1, 1]} : vector<10x18x128xbf16> to vector<8x16x128xbf16>
    %9 = vector.shape_cast %8 : vector<8x16x128xbf16> to vector<128x128xbf16>
    %10 = vector.extract_strided_slice %1 {offsets = [1, 1, 0], sizes = [8, 16, 128], strides = [1, 1, 1]} : vector<10x18x128xbf16> to vector<8x16x128xbf16>
    %11 = vector.shape_cast %10 : vector<8x16x128xbf16> to vector<128x128xbf16>
    %12 = vector.extract_strided_slice %1 {offsets = [1, 2, 0], sizes = [8, 16, 128], strides = [1, 1, 1]} : vector<10x18x128xbf16> to vector<8x16x128xbf16>
    %13 = vector.shape_cast %12 : vector<8x16x128xbf16> to vector<128x128xbf16>
    %14 = vector.extract_strided_slice %1 {offsets = [2, 0, 0], sizes = [8, 16, 128], strides = [1, 1, 1]} : vector<10x18x128xbf16> to vector<8x16x128xbf16>
    %15 = vector.shape_cast %14 : vector<8x16x128xbf16> to vector<128x128xbf16>
    %16 = vector.extract_strided_slice %1 {offsets = [2, 1, 0], sizes = [8, 16, 128], strides = [1, 1, 1]} : vector<10x18x128xbf16> to vector<8x16x128xbf16>
    %17 = vector.shape_cast %16 : vector<8x16x128xbf16> to vector<128x128xbf16>
    %18 = vector.extract_strided_slice %1 {offsets = [2, 2, 0], sizes = [8, 16, 128], strides = [1, 1, 1]} : vector<10x18x128xbf16> to vector<8x16x128xbf16>
    %19 = vector.shape_cast %18 : vector<8x16x128xbf16> to vector<128x128xbf16>
    %20 = tpu.concatenate %3, %5, %7, %9, %11, %13, %15, %17, %19 in 1 : vector<128x128xbf16>, vector<128x128xbf16>, vector<128x128xbf16>, vector<128x128xbf16>, vector<128x128xbf16>, vector<128x128xbf16>, vector<128x128xbf16>, vector<128x128xbf16>, vector<128x128xbf16> -> vector<128x1152xbf16>
    %c0_3 = arith.constant 0 : index
    %c0_4 = arith.constant 0 : index
    %21 = vector.load %arg3[%c0_3, %c0_4] : memref<1152x128xbf16, #tpu.memory_space<vmem>>, vector<1152x128xbf16>
    %cst = arith.constant dense<0.000000e+00> : vector<128x128xf32>
    %22 = tpu.matmul %20, %21, %cst {dimension_numbers = #tpu.dot_dimension_numbers<[1], [0], [0], [1], [0, 0, 1, 1], [], []>} : vector<128x1152xbf16>, vector<1152x128xbf16>, vector<128x128xf32> -> vector<128x128xf32>
    %c0_5 = arith.constant 0 : index
    %c0_6 = arith.constant 0 : index
    %23 = vector.load %arg4[%c0_5, %c0_6] : memref<1x128xf32, #tpu.memory_space<vmem>>, vector<1x128xf32>
    %24 = vector.broadcast %23 : vector<1x128xf32> to vector<128x128xf32>
    %25 = arith.addf %22, %24 : vector<128x128xf32>
    %cst_7 = arith.constant 2.000000e+01 : f32
    %26 = vector.broadcast %cst_7 : f32 to vector<128x128xf32>
    %27 = arith.minimumf %25, %26 : vector<128x128xf32>
    %28 = math.exp %27 : vector<128x128xf32>
    %cst_8 = arith.constant 2.000000e+00 : f32
    %29 = vector.broadcast %cst_8 : f32 to vector<128x128xf32>
    %30 = arith.addf %28, %29 : vector<128x128xf32>
    %31 = arith.mulf %28, %30 : vector<128x128xf32>
    %cst_9 = arith.constant 2.000000e+00 : f32
    %32 = vector.broadcast %cst_9 : f32 to vector<128x128xf32>
    %33 = arith.addf %31, %32 : vector<128x128xf32>
    %34 = tpu.reciprocal %33 {approx = true} : vector<128x128xf32> -> vector<128x128xf32>
    %35 = arith.mulf %31, %34 : vector<128x128xf32>
    %36 = arith.mulf %25, %35 : vector<128x128xf32>
    %37 = vector.shape_cast %36 : vector<128x128xf32> to vector<8x16x128xf32>
    %c0_10 = arith.constant 0 : index
    %c0_11 = arith.constant 0 : index
    %c0_12 = arith.constant 0 : index
    %c0_13 = arith.constant 0 : index
    %38 = vector.load %arg5[%c0_10, %c0_11, %c0_12, %c0_13] : memref<1x8x16x128xf32, #tpu.memory_space<vmem>>, vector<1x8x16x128xf32>
    %39 = vector.shape_cast %38 : vector<1x8x16x128xf32> to vector<8x16x128xf32>
    %40 = vector.shape_cast %37 : vector<8x16x128xf32> to vector<1x8x16x128xf32>
    tpu.vector_store %arg5[%c0_10, %c0_11, %c0_12, %c0_13], %40 {strides = array<i32>} : memref<1x8x16x128xf32, #tpu.memory_space<vmem>>, vector<1x8x16x128xf32>,
    return
  }
  func.func @transform_0(%arg0: i32, %arg1: i32) -> (i32, i32, i32, i32) {
    %c2_i32 = arith.constant 2 : i32
    %0 = arith.muli %arg0, %c2_i32 : i32
    %1 = arith.addi %0, %arg1 : i32
    %c0_i32 = arith.constant 0 : i32
    %c0_i32_0 = arith.constant 0 : i32
    %c0_i32_1 = arith.constant 0 : i32
    %c0_i32_2 = arith.constant 0 : i32
    return %1, %c0_i32, %c0_i32_0, %c0_i32_1 : i32, i32, i32, i32
  }
  func.func @transform_1(%arg0: i32, %arg1: i32) -> (i32, i32) {
    %c0_i32 = arith.constant 0 : i32
    %c0_i32_0 = arith.constant 0 : i32
    %c0_i32_1 = arith.constant 0 : i32
    return %c0_i32, %c0_i32_0 : i32, i32
  }
  func.func @transform_2(%arg0: i32, %arg1: i32) -> (i32, i32) {
    %c0_i32 = arith.constant 0 : i32
    %c0_i32_0 = arith.constant 0 : i32
    %c0_i32_1 = arith.constant 0 : i32
    return %c0_i32, %c0_i32_0 : i32, i32
  }
  func.func @transform_3(%arg0: i32, %arg1: i32) -> (i32, i32, i32, i32) {
    %c0_i32 = arith.constant 0 : i32
    %c0_i32_0 = arith.constant 0 : i32
    %c0_i32_1 = arith.constant 0 : i32
    return %arg0, %arg1, %c0_i32, %c0_i32_0 : i32, i32, i32, i32
  }
}

</mosaic_0001>

<llo_original>
// kernel: tpu_custom_call.1
$region0: #{tpu_custom_call.1}
  #allocation0 [shape = 'u32[]', space=smem, size = 0x4, offset = 0x4, fixed_abs, tag = 'smem constant byte address 0x4 - core index']
  #allocation1 [shape = 'u32[144,128]{1,0:T(1,128)}', space=vmem, size = 0x12000, scoped, tag = 'internal scratch']
  %s0 = inlined_call_operand.vmem [shape: bf16[4,10,18,128], index: 0, kind: input, shape index: {}]
  %s1 = inlined_call_operand.vmem [shape: bf16[1152,128], index: 1, kind: input, shape index: {}]
  %s2 = inlined_call_operand.vmem [shape: f32[1,128], index: 2, kind: input, shape index: {}]
  %s3 = inlined_call_operand.hbm [shape: f32[2,16,16,128], index: 3, kind: output, shape index: {}]
  %s4 = sld [smem:[#allocation0]]
  $region45: #{tpu_custom_call.1} parent=0
    _
  %s6 = ssub.s32 1, %s4
  %s7 = scalar_select 0, %s6, %s4
  $region1: #{tpu_custom_call.1} parent=0
    #allocation2 [shape = 'u8[131072]{0}', space=vmem, size = 0x20000, scoped, tag = 'output window, operand 0']
    #allocation3 [shape = 's32[2]{0}', space=sflag, size = 0x8, scoped, tag = 'scoped memory for tpu_custom_call.1']
    %8 = vsyncpa [#allocation3], 0
    %s9 = scalar_lea.sflag [#allocation3], 1
    %10 = vsyncpa %s9, 0
    loop: start=0, step=1, limit=6
    $region2: #{tpu_custom_call.1} parent=1 // loop_pre_header
      _
    $region3: #{tpu_custom_call.1} parent=1 // loop_header
      %s12 = sphi 0, %s16
      %p13 = scmp.ge.s32.totalorder %s12, 6
      %s19 = sphi 0, %s31
      %s20 = sphi 0, %s27
      %s21 = sphi 0, %s19
      %s22 = sphi 0, %s20
      %s23 = sphi 0, %s21
      %s24 = sphi 0, %s22
      %s38 = sphi 0, %s40
      %s41 = sphi 0, %s38
      %s42 = sphi 0, %s41
      %s58 = sphi 0, %s42
      %s62 = sphi 0, %s62
      %s64 = sphi 0, %s62
      %s65 = sphi 0, %s64
      %s79 = sphi 0, %s65
      %s83 = sphi 0, %s83
      %s85 = sphi 0, %s83
      %s86 = sphi 0, %s85
      %s100 = sphi 0, %s86
      %s108 = sphi 0, %s110
      %s111 = sphi 0, %s108
      %s112 = sphi 0, %s111
      %s128 = sphi 0, %s112
    $region4: #{tpu_custom_call.1} parent=1 // loop_header_branch
      %15 = sbr.rel (%p13) target = $region8
    $region5: #{tpu_custom_call.1} parent=1 // loop_body
      %s17 = ssub.s32 %s12, 1
      %s18 = ssub.s32 %s12, 2
      %s25 = sadd.s32 1, %s20
      %p26 = scmp.ge.s32.totalorder %s25, 2
      %s27 = scalar_select %p26, 0, %s25
      %s28 = sadd.s32 1, %s19
      %s29 = scalar_select %p26, %s28, %s19
      %p30 = scmp.ge.s32.totalorder %s29, 2
      %s31 = scalar_select %p30, 0, %s29
      %s32 = smul.u32 %s19, 2
      %s33 = sadd.s32 %s32, %s20
      %s34 = smul.u32 %s31, 2
      %s35 = sadd.s32 %s34, %s27
      %s36 = ssub.s32 %s33, %s35
      %p37 = scmp.eq.s32.totalorder %s36, 0
      %s39 = sadd.s32 %s38, 1
      %s40 = scalar_select %p37, %s38, %s39
      %p43 = pneg %p37
      %p44 = scmp.eq.s32.totalorder %s12, 3
      %p45 = por %p43, %p44
      %p46 = scmp.ne.s32.totalorder %s38, %s41
      %p47 = scmp.eq.s32.totalorder %s12, 0
      %p48 = por %p46, %p47
      %p49 = scmp.ne.s32.totalorder %s38, %s41
      %p50 = scmp.eq.s32.totalorder %s17, 3
      %p51 = por %p49, %p50
      %p52 = scmp.ne.s32.totalorder %s41, %s42
      %p53 = scmp.eq.s32.totalorder %s17, 0
      %p54 = por %p52, %p53
      %p55 = scmp.ne.s32.totalorder %s41, %s42
      %p56 = scmp.eq.s32.totalorder %s18, 3
      %p57 = por %p55, %p56
      %p59 = scmp.ne.s32.totalorder %s42, %s58
      %p60 = scmp.eq.s32.totalorder %s18, 0
      %p61 = por %p59, %p60
      %s63 = sadd.s32 %s62, 1
      %p66 = scmp.eq.s32.totalorder %s12, 3
      %p67 = scmp.ne.s32.totalorder %s62, %s64
      %p68 = scmp.eq.s32.totalorder %s12, 0
      %p69 = por %p67, %p68
      %p70 = scmp.ne.s32.totalorder %s62, %s64
      %p71 = scmp.eq.s32.totalorder %s17, 3
      %p72 = por %p70, %p71
      %p73 = scmp.ne.s32.totalorder %s64, %s65
      %p74 = scmp.eq.s32.totalorder %s17, 0
      %p75 = por %p73, %p74
      %p76 = scmp.ne.s32.totalorder %s64, %s65
      %p77 = scmp.eq.s32.totalorder %s18, 3
      %p78 = por %p76, %p77
      %p80 = scmp.ne.s32.totalorder %s65, %s79
      %p81 = scmp.eq.s32.totalorder %s18, 0
      %p82 = por %p80, %p81
      %s84 = sadd.s32 %s83, 1
      %p87 = scmp.eq.s32.totalorder %s12, 3
      %p88 = scmp.ne.s32.totalorder %s83, %s85
      %p89 = scmp.eq.s32.totalorder %s12, 0
      %p90 = por %p88, %p89
      %p91 = scmp.ne.s32.totalorder %s83, %s85
      %p92 = scmp.eq.s32.totalorder %s17, 3
      %p93 = por %p91, %p92
      %p94 = scmp.ne.s32.totalorder %s85, %s86
      %p95 = scmp.eq.s32.totalorder %s17, 0
      %p96 = por %p94, %p95
      %p97 = scmp.ne.s32.totalorder %s85, %s86
      %p98 = scmp.eq.s32.totalorder %s18, 3
      %p99 = por %p97, %p98
      %p101 = scmp.ne.s32.totalorder %s86, %s100
      %p102 = scmp.eq.s32.totalorder %s18, 0
      %p103 = por %p101, %p102
      %s104 = ssub.s32 %s19, %s31
      %s105 = ssub.s32 %s20, %s27
      %s106 = sor.u32 %s104, %s105
      %p107 = scmp.eq.s32.totalorder %s106, 0
      %s109 = sadd.s32 %s108, 1
      %s110 = scalar_select %p107, %s108, %s109
      %p113 = pneg %p107
      %p114 = scmp.eq.s32.totalorder %s12, 3
      %p115 = por %p113, %p114
      %p116 = scmp.ne.s32.totalorder %s108, %s111
      %p117 = scmp.eq.s32.totalorder %s12, 0
      %p118 = por %p116, %p117
      %p119 = scmp.ne.s32.totalorder %s108, %s111
      %p120 = scmp.eq.s32.totalorder %s17, 3
      %p121 = por %p119, %p120
      %p122 = scmp.ne.s32.totalorder %s111, %s112
      %p123 = scmp.eq.s32.totalorder %s17, 0
      %p124 = por %p122, %p123
      %p125 = scmp.ne.s32.totalorder %s111, %s112
      %p126 = scmp.eq.s32.totalorder %s18, 3
      %p127 = por %p125, %p126
      %p129 = scmp.ne.s32.totalorder %s112, %s128
      %p130 = scmp.eq.s32.totalorder %s18, 0
      %p131 = por %p129, %p130
      %p132 = scmp.le.s32.totalorder 1, %s12
      %p133 = scmp.lt.s32.totalorder %s12, 5
      %p134 = pnand %p132, %p133
      %p135 = pneg %p134
      // Predicated region
      $region9: #{tpu_custom_call.1} parent=5 // pred_check
        _
      $region10: #{tpu_custom_call.1} parent=5 // pred_check_branch
        %137 = sbr.rel (%p134) target = $region12
      $region11: #{tpu_custom_call.1} parent=5 // pred_region
        %s138 = ssub.s32 %s12, 1
        // Predicated region
        $region13: #{tpu_custom_call.1} parent=11 // pred_check
          %p139 = pneg %p75
        $region14: #{tpu_custom_call.1} parent=11 // pred_check_branch
          %141 = sbr.rel (%p139) target = $region16
        $region15: #{tpu_custom_call.1} parent=11 // pred_region
          _
        $region16: #{tpu_custom_call.1} parent=11 // pred_fallthru
          _
        // Predicated region
        $region17: #{tpu_custom_call.1} parent=11 // pred_check
          %p142 = pneg %p96
        $region18: #{tpu_custom_call.1} parent=11 // pred_check_branch
          %144 = sbr.rel (%p142) target = $region20
        $region19: #{tpu_custom_call.1} parent=11 // pred_region
          _
        $region20: #{tpu_custom_call.1} parent=11 // pred_fallthru
          _
      $region12: #{tpu_custom_call.1} parent=5 // pred_fallthru
        _
      %p145 = scmp.lt.s32.totalorder %s12, 4
      // Predicated region
      $region21: #{tpu_custom_call.1} parent=5 // pred_check
        %p146 = pneg %p145
      $region22: #{tpu_custom_call.1} parent=5 // pred_check_branch
        %148 = sbr.rel (%p146) target = $region24
      $region23: #{tpu_custom_call.1} parent=5 // pred_region
        // Predicated region
        $region25: #{tpu_custom_call.1} parent=23 // pred_check
          %p149 = pneg %p48
        $region26: #{tpu_custom_call.1} parent=23 // pred_check_branch
          %151 = sbr.rel (%p149) target = $region28
        $region27: #{tpu_custom_call.1} parent=23 // pred_region
          %s152 = smul.u32 %s19, 2
          %s153 = sadd.s32 %s152, %s20
          %p154 = scmp.lt.s32.totalorder %s153, 3
          %s155 = scalar_select %p154, %s153, 3
          %s156 = smul.addr %s155, 30
          %s157 = smul.addr %s156, 4
          %s158 = scalar_lea.vmem %s0, %s157
          %s159 = smul.u32 %s19, 2
          %s160 = sadd.s32 %s159, %s20
        $region28: #{tpu_custom_call.1} parent=23 // pred_fallthru
          _
      $region24: #{tpu_custom_call.1} parent=5 // pred_fallthru
        _
      %p161 = scmp.le.s32.totalorder 1, %s12
      %p162 = scmp.lt.s32.totalorder %s12, 5
      %p163 = pnand %p161, %p162
      %p164 = pneg %p163
      // Predicated region
      $region29: #{tpu_custom_call.1} parent=5 // pred_check
        _
      $region30: #{tpu_custom_call.1} parent=5 // pred_check_branch
        %166 = sbr.rel (%p163) target = $region32
      $region31: #{tpu_custom_call.1} parent=5 // pred_region
        %s167 = ssub.s32 %s12, 1
        %s168 = smul.u32 %s21, 2
        %s169 = sadd.s32 %s168, %s22
        %p170 = scmp.lt.s32.totalorder %s169, 3
        %s171 = scalar_select %p170, %s169, 3
        %s172 = smul.addr %s171, 30
        %s173 = smul.addr %s172, 4
        %s174 = scalar_lea.vmem %s0, %s173
        %p175 = pneg %p54
        %p176 = pneg %p51
        %p177 = pneg %p75
        %p178 = pneg %p72
        %p179 = pneg %p96
        %p180 = pneg %p93
        %p181 = pneg %p124
        %p182 = pneg %p121
        %s183 = sand.u32 %s111, 1
        %s184 = scalar_lea.sflag [#allocation3], %s183
        %s185 = sand.u32 %s111, 1
        %s186 = smul.addr %s185, 128
        %s187 = scalar_lea.vmem [#allocation2], %s186
        %s188 = smul.u32 %s21, 2
        %s189 = sadd.s32 %s188, %s22
        %p190 = scmp.lt.s32.totalorder %s189, 3
        %s191 = scalar_select %p190, %s189, 3
        %s192 = smul.addr %s191, 30
        %s193 = smul.addr %s192, 4
        %s194 = scalar_lea.vmem %s0, %s193
        %s195 = smul.u32 %s21, 2
        %s196 = sadd.s32 %s195, %s22
        %s197 = smul.u32 8, %s22
        %v199 = vld [vmem:[%s194] sm:$0xf]
        %v200 = vld [vmem:[%s194 + $0x4] sm:$0xf]
        %v201 = vld [vmem:[%s194 + $0x8] sm:$0x1]
        %v202 = vld [vmem:[%s194 + $0xc] sm:$0xf]
        %v203 = vld [vmem:[%s194 + $0x10] sm:$0xf]
        %v204 = vld [vmem:[%s194 + $0x14] sm:$0x1]
        %v205 = vld [vmem:[%s194 + $0x18] sm:$0xf]
        %v206 = vld [vmem:[%s194 + $0x1c] sm:$0xf]
        %v207 = vld [vmem:[%s194 + $0x20] sm:$0x1]
        %v208 = vld [vmem:[%s194 + $0x24] sm:$0xf]
        %v209 = vld [vmem:[%s194 + $0x28] sm:$0xf]
        %v210 = vld [vmem:[%s194 + $0x2c] sm:$0x1]
        %v211 = vld [vmem:[%s194 + $0x30] sm:$0xf]
        %v212 = vld [vmem:[%s194 + $0x34] sm:$0xf]
        %v213 = vld [vmem:[%s194 + $0x38] sm:$0x1]
        %v214 = vld [vmem:[%s194 + $0x3c] sm:$0xf]
        %v215 = vld [vmem:[%s194 + $0x40] sm:$0xf]
        %v216 = vld [vmem:[%s194 + $0x44] sm:$0x1]
        %v217 = vld [vmem:[%s194 + $0x48] sm:$0xf]
        %v218 = vld [vmem:[%s194 + $0x4c] sm:$0xf]
        %v219 = vld [vmem:[%s194 + $0x50] sm:$0x1]
        %v220 = vld [vmem:[%s194 + $0x54] sm:$0xf]
        %v221 = vld [vmem:[%s194 + $0x58] sm:$0xf]
        %v222 = vld [vmem:[%s194 + $0x5c] sm:$0x1]
        %v223 = vld [vmem:[%s194 + $0x60] sm:$0xf]
        %v224 = vld [vmem:[%s194 + $0x64] sm:$0xf]
        %v225 = vld [vmem:[%s194 + $0x68] sm:$0x1]
        %v226 = vld [vmem:[%s194 + $0x6c] sm:$0xf]
        %v227 = vld [vmem:[%s194 + $0x70] sm:$0xf]
        %v228 = vld [vmem:[%s194 + $0x74] sm:$0x1]
        %vm229 = vsmask.f32 3328
        %vm230 = vsmask.f32 7440
        %vm231 = vmor %vm229, %vm230
        %v233 = vshrl.u32 %v199, 16
        %v235 = vrot.slane %v233, 4
        %v236 = vshll.u32 %v199, 16
        %v238 = vrot.slane %v236, 5
        %v239 = vor.u32 %v235, %v238
        %v240 = vrot.slane %v239, 4
        %v242 = vshll.u32 %v200, 16
        %v244 = vrot.slane %v242, 5
        %v245 = vsel %vm231, %v240, %v244
        %v246 = vshrl.u32 %v200, 16
        %v248 = vrot.slane %v246, 4
        %v249 = vor.u32 %v248, %v244
        %v250 = vrot.slane %v249, 4
        %v252 = vshll.u32 %v201, 16
        %v254 = vrot.slane %v252, 5
        %v255 = vsel %vm231, %v250, %v254
        %v257 = vshrl.u32 %v202, 16
        %v259 = vrot.slane %v257, 4
        %v260 = vshll.u32 %v202, 16
        %v262 = vrot.slane %v260, 5
        %v263 = vor.u32 %v259, %v262
        %v264 = vrot.slane %v263, 4
        %v266 = vshll.u32 %v203, 16
        %v268 = vrot.slane %v266, 5
        %v269 = vsel %vm231, %v264, %v268
        %v270 = vshrl.u32 %v203, 16
        %v272 = vrot.slane %v270, 4
        %v273 = vor.u32 %v272, %v268
        %v274 = vrot.slane %v273, 4
        %v276 = vshll.u32 %v204, 16
        %v278 = vrot.slane %v276, 5
        %v279 = vsel %vm231, %v274, %v278
        %v281 = vshrl.u32 %v205, 16
        %v283 = vrot.slane %v281, 4
        %v284 = vshll.u32 %v205, 16
        %v286 = vrot.slane %v284, 5
        %v287 = vor.u32 %v283, %v286
        %v288 = vrot.slane %v287, 4
        %v290 = vshll.u32 %v206, 16
        %v292 = vrot.slane %v290, 5
        %v293 = vsel %vm231, %v288, %v292
        %v294 = vshrl.u32 %v206, 16
        %v296 = vrot.slane %v294, 4
        %v297 = vor.u32 %v296, %v292
        %v298 = vrot.slane %v297, 4
        %v300 = vshll.u32 %v207, 16
        %v302 = vrot.slane %v300, 5
        %v303 = vsel %vm231, %v298, %v302
        %v305 = vshrl.u32 %v208, 16
        %v307 = vrot.slane %v305, 4
        %v308 = vshll.u32 %v208, 16
        %v310 = vrot.slane %v308, 5
        %v311 = vor.u32 %v307, %v310
        %v312 = vrot.slane %v311, 4
        %v314 = vshll.u32 %v209, 16
        %v316 = vrot.slane %v314, 5
        %v317 = vsel %vm231, %v312, %v316
        %v318 = vshrl.u32 %v209, 16
        %v320 = vrot.slane %v318, 4
        %v321 = vor.u32 %v320, %v316
        %v322 = vrot.slane %v321, 4
        %v324 = vshll.u32 %v210, 16
        %v326 = vrot.slane %v324, 5
        %v327 = vsel %vm231, %v322, %v326
        %v329 = vshrl.u32 %v211, 16
        %v331 = vrot.slane %v329, 4
        %v332 = vshll.u32 %v211, 16
        %v334 = vrot.slane %v332, 5
        %v335 = vor.u32 %v331, %v334
        %v336 = vrot.slane %v335, 4
        %v338 = vshll.u32 %v212, 16
        %v340 = vrot.slane %v338, 5
        %v341 = vsel %vm231, %v336, %v340
        %v342 = vshrl.u32 %v212, 16
        %v344 = vrot.slane %v342, 4
        %v345 = vor.u32 %v344, %v340
        %v346 = vrot.slane %v345, 4
        %v348 = vshll.u32 %v213, 16
        %v350 = vrot.slane %v348, 5
        %v351 = vsel %vm231, %v346, %v350
        %v353 = vshrl.u32 %v214, 16
        %v355 = vrot.slane %v353, 4
        %v356 = vshll.u32 %v214, 16
        %v358 = vrot.slane %v356, 5
        %v359 = vor.u32 %v355, %v358
        %v360 = vrot.slane %v359, 4
        %v362 = vshll.u32 %v215, 16
        %v364 = vrot.slane %v362, 5
        %v365 = vsel %vm231, %v360, %v364
        %v366 = vshrl.u32 %v215, 16
        %v368 = vrot.slane %v366, 4
        %v369 = vor.u32 %v368, %v364
        %v370 = vrot.slane %v369, 4
        %v372 = vshll.u32 %v216, 16
        %v374 = vrot.slane %v372, 5
        %v375 = vsel %vm231, %v370, %v374
        %v377 = vshrl.u32 %v217, 16
        %v379 = vrot.slane %v377, 4
        %v380 = vshll.u32 %v217, 16
        %v382 = vrot.slane %v380, 5
        %v383 = vor.u32 %v379, %v382
        %v384 = vrot.slane %v383, 4
        %v386 = vshll.u32 %v218, 16
        %v388 = vrot.slane %v386, 5
        %v389 = vsel %vm231, %v384, %v388
        %v390 = vshrl.u32 %v218, 16
        %v392 = vrot.slane %v390, 4
        %v393 = vor.u32 %v392, %v388
        %v394 = vrot.slane %v393, 4
        %v396 = vshll.u32 %v219, 16
        %v398 = vrot.slane %v396, 5
        %v399 = vsel %vm231, %v394, %v398
        %v401 = vshrl.u32 %v220, 16
        %v403 = vrot.slane %v401, 4
        %v404 = vshll.u32 %v220, 16
        %v406 = vrot.slane %v404, 5
        %v407 = vor.u32 %v403, %v406
        %v408 = vrot.slane %v407, 4
        %v410 = vshll.u32 %v221, 16
        %v412 = vrot.slane %v410, 5
        %v413 = vsel %vm231, %v408, %v412
        %v414 = vshrl.u32 %v221, 16
        %v416 = vrot.slane %v414, 4
        %v417 = vor.u32 %v416, %v412
        %v418 = vrot.slane %v417, 4
        %v420 = vshll.u32 %v222, 16
        %v422 = vrot.slane %v420, 5
        %v423 = vsel %vm231, %v418, %v422
        %vm448 = vcmask 1042432
        %vm449 = vcmask 1046532
        %vm450 = vmor %vm448, %vm449
        %v451 = vrot.slane %v199, 5
        %v452 = vrot.slane %v451, 4
        %v453 = vrot.slane %v200, 5
        %v454 = vsel %vm450, %v452, %v453
        %v455 = vrot.slane %v453, 4
        %v456 = vrot.slane %v201, 5
        %v457 = vsel %vm450, %v455, %v456
        %v458 = vrot.slane %v202, 5
        %v459 = vrot.slane %v458, 4
        %v460 = vrot.slane %v203, 5
        %v461 = vsel %vm450, %v459, %v460
        %v462 = vrot.slane %v460, 4
        %v463 = vrot.slane %v204, 5
        %v464 = vsel %vm450, %v462, %v463
        %v465 = vrot.slane %v205, 5
        %v466 = vrot.slane %v465, 4
        %v467 = vrot.slane %v206, 5
        %v468 = vsel %vm450, %v466, %v467
        %v469 = vrot.slane %v467, 4
        %v470 = vrot.slane %v207, 5
        %v471 = vsel %vm450, %v469, %v470
        %v472 = vrot.slane %v208, 5
        %v473 = vrot.slane %v472, 4
        %v474 = vrot.slane %v209, 5
        %v475 = vsel %vm450, %v473, %v474
        %v476 = vrot.slane %v474, 4
        %v477 = vrot.slane %v210, 5
        %v478 = vsel %vm450, %v476, %v477
        %v479 = vrot.slane %v211, 5
        %v480 = vrot.slane %v479, 4
        %v481 = vrot.slane %v212, 5
        %v482 = vsel %vm450, %v480, %v481
        %v483 = vrot.slane %v481, 4
        %v484 = vrot.slane %v213, 5
        %v485 = vsel %vm450, %v483, %v484
        %v486 = vrot.slane %v214, 5
        %v487 = vrot.slane %v486, 4
        %v488 = vrot.slane %v215, 5
        %v489 = vsel %vm450, %v487, %v488
        %v490 = vrot.slane %v488, 4
        %v491 = vrot.slane %v216, 5
        %v492 = vsel %vm450, %v490, %v491
        %v493 = vrot.slane %v217, 5
        %v494 = vrot.slane %v493, 4
        %v495 = vrot.slane %v218, 5
        %v496 = vsel %vm450, %v494, %v495
        %v497 = vrot.slane %v495, 4
        %v498 = vrot.slane %v219, 5
        %v499 = vsel %vm450, %v497, %v498
        %v500 = vrot.slane %v220, 5
        %v501 = vrot.slane %v500, 4
        %v502 = vrot.slane %v221, 5
        %v503 = vsel %vm450, %v501, %v502
        %v504 = vrot.slane %v502, 4
        %v505 = vrot.slane %v222, 5
        %v506 = vsel %vm450, %v504, %v505
        %v508 = vshrl.u32 %v223, 16
        %v510 = vrot.slane %v508, 4
        %v511 = vshll.u32 %v223, 16
        %v513 = vrot.slane %v511, 5
        %v514 = vor.u32 %v510, %v513
        %v515 = vrot.slane %v514, 4
        %v517 = vshll.u32 %v224, 16
        %v519 = vrot.slane %v517, 5
        %v520 = vsel %vm231, %v515, %v519
        %v521 = vshrl.u32 %v224, 16
        %v523 = vrot.slane %v521, 4
        %v524 = vor.u32 %v523, %v519
        %v525 = vrot.slane %v524, 4
        %v527 = vshll.u32 %v225, 16
        %v529 = vrot.slane %v527, 5
        %v530 = vsel %vm231, %v525, %v529
        %v534 = vrot.slane %v223, 5
        %v535 = vrot.slane %v534, 4
        %v536 = vrot.slane %v224, 5
        %v537 = vsel %vm450, %v535, %v536
        %v538 = vrot.slane %v536, 4
        %v539 = vrot.slane %v225, 5
        %v540 = vsel %vm450, %v538, %v539
        %v542 = vshrl.u32 %v226, 16
        %v544 = vrot.slane %v542, 4
        %v545 = vshll.u32 %v226, 16
        %v547 = vrot.slane %v545, 5
        %v548 = vor.u32 %v544, %v547
        %v549 = vrot.slane %v548, 4
        %v551 = vshll.u32 %v227, 16
        %v553 = vrot.slane %v551, 5
        %v554 = vsel %vm231, %v549, %v553
        %v555 = vshrl.u32 %v227, 16
        %v557 = vrot.slane %v555, 4
        %v558 = vor.u32 %v557, %v553
        %v559 = vrot.slane %v558, 4
        %v561 = vshll.u32 %v228, 16
        %v563 = vrot.slane %v561, 5
        %v564 = vsel %vm231, %v559, %v563
        %v568 = vrot.slane %v226, 5
        %v569 = vrot.slane %v568, 4
        %v570 = vrot.slane %v227, 5
        %v571 = vsel %vm450, %v569, %v570
        %v572 = vrot.slane %v570, 4
        %v573 = vrot.slane %v228, 5
        %v574 = vsel %vm450, %v572, %v573
        %v575 = vunpack.c.l.b16 %v199
        %v576 = vunpack.c.l.b16 %v200
        %v577 = vunpack.c.l.b16 %v202
        %v578 = vunpack.c.l.b16 %v203
        %v579 = vunpack.c.l.b16 %v205
        %v580 = vunpack.c.l.b16 %v206
        %v581 = vunpack.c.l.b16 %v208
        %v582 = vunpack.c.l.b16 %v209
        %v583 = vunpack.c.l.b16 %v211
        %v584 = vunpack.c.l.b16 %v212
        %v585 = vunpack.c.l.b16 %v214
        %v586 = vunpack.c.l.b16 %v215
        %v587 = vunpack.c.l.b16 %v217
        %v588 = vunpack.c.l.b16 %v218
        %v589 = vunpack.c.l.b16 %v220
        %v590 = vunpack.c.l.b16 %v221
        %v591 = vpack.c.b16 %v576, %v575
        %v592 = vpack.c.b16 %v578, %v577
        %v593 = vpack.c.b16 %v580, %v579
        %v594 = vpack.c.b16 %v582, %v581
        %v595 = vpack.c.b16 %v584, %v583
        %v596 = vpack.c.b16 %v586, %v585
        %v597 = vpack.c.b16 %v588, %v587
        %v598 = vpack.c.b16 %v590, %v589
        %v607 = vunpack.c.l.b16 %v245
        %v608 = vunpack.c.l.b16 %v255
        %v609 = vunpack.c.l.b16 %v269
        %v610 = vunpack.c.l.b16 %v279
        %v611 = vunpack.c.l.b16 %v293
        %v612 = vunpack.c.l.b16 %v303
        %v613 = vunpack.c.l.b16 %v317
        %v614 = vunpack.c.l.b16 %v327
        %v615 = vunpack.c.l.b16 %v341
        %v616 = vunpack.c.l.b16 %v351
        %v617 = vunpack.c.l.b16 %v365
        %v618 = vunpack.c.l.b16 %v375
        %v619 = vunpack.c.l.b16 %v389
        %v620 = vunpack.c.l.b16 %v399
        %v621 = vunpack.c.l.b16 %v413
        %v622 = vunpack.c.l.b16 %v423
        %v623 = vpack.c.b16 %v608, %v607
        %v624 = vpack.c.b16 %v610, %v609
        %v625 = vpack.c.b16 %v612, %v611
        %v626 = vpack.c.b16 %v614, %v613
        %v627 = vpack.c.b16 %v616, %v615
        %v628 = vpack.c.b16 %v618, %v617
        %v629 = vpack.c.b16 %v620, %v619
        %v630 = vpack.c.b16 %v622, %v621
        %v639 = vunpack.c.l.b16 %v454
        %v640 = vunpack.c.l.b16 %v457
        %v641 = vunpack.c.l.b16 %v461
        %v642 = vunpack.c.l.b16 %v464
        %v643 = vunpack.c.l.b16 %v468
        %v644 = vunpack.c.l.b16 %v471
        %v645 = vunpack.c.l.b16 %v475
        %v646 = vunpack.c.l.b16 %v478
        %v647 = vunpack.c.l.b16 %v482
        %v648 = vunpack.c.l.b16 %v485
        %v649 = vunpack.c.l.b16 %v489
        %v650 = vunpack.c.l.b16 %v492
        %v651 = vunpack.c.l.b16 %v496
        %v652 = vunpack.c.l.b16 %v499
        %v653 = vunpack.c.l.b16 %v503
        %v654 = vunpack.c.l.b16 %v506
        %v655 = vpack.c.b16 %v640, %v639
        %v656 = vpack.c.b16 %v642, %v641
        %v657 = vpack.c.b16 %v644, %v643
        %v658 = vpack.c.b16 %v646, %v645
        %v659 = vpack.c.b16 %v648, %v647
        %v660 = vpack.c.b16 %v650, %v649
        %v661 = vpack.c.b16 %v652, %v651
        %v662 = vpack.c.b16 %v654, %v653
        %v671 = vunpack.c.l.b16 %v223
        %v672 = vunpack.c.l.b16 %v224
        %v673 = vpack.c.b16 %v672, %v671
        %v675 = vunpack.c.l.b16 %v520
        %v676 = vunpack.c.l.b16 %v530
        %v677 = vpack.c.b16 %v676, %v675
        %v679 = vunpack.c.l.b16 %v537
        %v680 = vunpack.c.l.b16 %v540
        %v681 = vpack.c.b16 %v680, %v679
        %v683 = vunpack.c.l.b16 %v226
        %v684 = vunpack.c.l.b16 %v227
        %v685 = vpack.c.b16 %v684, %v683
        %v687 = vunpack.c.l.b16 %v554
        %v688 = vunpack.c.l.b16 %v564
        %v689 = vpack.c.b16 %v688, %v687
        %v691 = vunpack.c.l.b16 %v571
        %v692 = vunpack.c.l.b16 %v574
        %v693 = vpack.c.b16 %v692, %v691
        %v695 = vld [vmem:[%s1] sm:$0xf]
        %v696 = vld [vmem:[%s1 + $0x4] sm:$0xf]
        %v697 = vld [vmem:[%s1 + $0x8] sm:$0xf]
        %v698 = vld [vmem:[%s1 + $0xc] sm:$0xf]
        %v699 = vld [vmem:[%s1 + $0x10] sm:$0xf]
        %v700 = vld [vmem:[%s1 + $0x14] sm:$0xf]
        %v701 = vld [vmem:[%s1 + $0x18] sm:$0xf]
        %v702 = vld [vmem:[%s1 + $0x1c] sm:$0xf]
        %v703 = vld [vmem:[%s1 + $0x20] sm:$0xf]
        %v704 = vld [vmem:[%s1 + $0x24] sm:$0xf]
        %v705 = vld [vmem:[%s1 + $0x28] sm:$0xf]
        %v706 = vld [vmem:[%s1 + $0x2c] sm:$0xf]
        %v707 = vld [vmem:[%s1 + $0x30] sm:$0xf]
        %v708 = vld [vmem:[%s1 + $0x34] sm:$0xf]
        %v709 = vld [vmem:[%s1 + $0x38] sm:$0xf]
        %v710 = vld [vmem:[%s1 + $0x3c] sm:$0xf]
        %v711 = vld [vmem:[%s1 + $0x40] sm:$0xf]
        %v712 = vld [vmem:[%s1 + $0x44] sm:$0xf]
        %v713 = vld [vmem:[%s1 + $0x48] sm:$0xf]
        %v714 = vld [vmem:[%s1 + $0x4c] sm:$0xf]
        %v715 = vld [vmem:[%s1 + $0x50] sm:$0xf]
        %v716 = vld [vmem:[%s1 + $0x54] sm:$0xf]
        %v717 = vld [vmem:[%s1 + $0x58] sm:$0xf]
        %v718 = vld [vmem:[%s1 + $0x5c] sm:$0xf]
        %v719 = vld [vmem:[%s1 + $0x60] sm:$0xf]
        %v720 = vld [vmem:[%s1 + $0x64] sm:$0xf]
        %v721 = vld [vmem:[%s1 + $0x68] sm:$0xf]
        %v722 = vld [vmem:[%s1 + $0x6c] sm:$0xf]
        %v723 = vld [vmem:[%s1 + $0x70] sm:$0xf]
        %v724 = vld [vmem:[%s1 + $0x74] sm:$0xf]
        %v725 = vld [vmem:[%s1 + $0x78] sm:$0xf]
        %v726 = vld [vmem:[%s1 + $0x7c] sm:$0xf]
        %v727 = vld [vmem:[%s1 + $0x80] sm:$0xf]
        %v728 = vld [vmem:[%s1 + $0x84] sm:$0xf]
        %v729 = vld [vmem:[%s1 + $0x88] sm:$0xf]
        %v730 = vld [vmem:[%s1 + $0x8c] sm:$0xf]
        %v731 = vld [vmem:[%s1 + $0x90] sm:$0xf]
        %v732 = vld [vmem:[%s1 + $0x94] sm:$0xf]
        %v733 = vld [vmem:[%s1 + $0x98] sm:$0xf]
        %v734 = vld [vmem:[%s1 + $0x9c] sm:$0xf]
        %v735 = vld [vmem:[%s1 + $0xa0] sm:$0xf]
        %v736 = vld [vmem:[%s1 + $0xa4] sm:$0xf]
        %v737 = vld [vmem:[%s1 + $0xa8] sm:$0xf]
        %v738 = vld [vmem:[%s1 + $0xac] sm:$0xf]
        %v739 = vld [vmem:[%s1 + $0xb0] sm:$0xf]
        %v740 = vld [vmem:[%s1 + $0xb4] sm:$0xf]
        %v741 = vld [vmem:[%s1 + $0xb8] sm:$0xf]
        %v742 = vld [vmem:[%s1 + $0xbc] sm:$0xf]
        %v743 = vld [vmem:[%s1 + $0xc0] sm:$0xf]
        %v744 = vld [vmem:[%s1 + $0xc4] sm:$0xf]
        %v745 = vld [vmem:[%s1 + $0xc8] sm:$0xf]
        %v746 = vld [vmem:[%s1 + $0xcc] sm:$0xf]
        %v747 = vld [vmem:[%s1 + $0xd0] sm:$0xf]
        %v748 = vld [vmem:[%s1 + $0xd4] sm:$0xf]
        %v749 = vld [vmem:[%s1 + $0xd8] sm:$0xf]
        %v750 = vld [vmem:[%s1 + $0xdc] sm:$0xf]
        %v751 = vld [vmem:[%s1 + $0xe0] sm:$0xf]
        %v752 = vld [vmem:[%s1 + $0xe4] sm:$0xf]
        %v753 = vld [vmem:[%s1 + $0xe8] sm:$0xf]
        %v754 = vld [vmem:[%s1 + $0xec] sm:$0xf]
        %v755 = vld [vmem:[%s1 + $0xf0] sm:$0xf]
        %v756 = vld [vmem:[%s1 + $0xf4] sm:$0xf]
        %v757 = vld [vmem:[%s1 + $0xf8] sm:$0xf]
        %v758 = vld [vmem:[%s1 + $0xfc] sm:$0xf]
        %v759 = vld [vmem:[%s1 + $0x100] sm:$0xf]
        %v760 = vld [vmem:[%s1 + $0x104] sm:$0xf]
        %v761 = vld [vmem:[%s1 + $0x108] sm:$0xf]
        %v762 = vld [vmem:[%s1 + $0x10c] sm:$0xf]
        %v763 = vld [vmem:[%s1 + $0x110] sm:$0xf]
        %v764 = vld [vmem:[%s1 + $0x114] sm:$0xf]
        %v765 = vld [vmem:[%s1 + $0x118] sm:$0xf]
        %v766 = vld [vmem:[%s1 + $0x11c] sm:$0xf]
        %v767 = vld [vmem:[%s1 + $0x120] sm:$0xf]
        %v768 = vld [vmem:[%s1 + $0x124] sm:$0xf]
        %v769 = vld [vmem:[%s1 + $0x128] sm:$0xf]
        %v770 = vld [vmem:[%s1 + $0x12c] sm:$0xf]
        %v771 = vld [vmem:[%s1 + $0x130] sm:$0xf]
        %v772 = vld [vmem:[%s1 + $0x134] sm:$0xf]
        %v773 = vld [vmem:[%s1 + $0x138] sm:$0xf]
        %v774 = vld [vmem:[%s1 + $0x13c] sm:$0xf]
        %v775 = vld [vmem:[%s1 + $0x140] sm:$0xf]
        %v776 = vld [vmem:[%s1 + $0x144] sm:$0xf]
        %v777 = vld [vmem:[%s1 + $0x148] sm:$0xf]
        %v778 = vld [vmem:[%s1 + $0x14c] sm:$0xf]
        %v779 = vld [vmem:[%s1 + $0x150] sm:$0xf]
        %v780 = vld [vmem:[%s1 + $0x154] sm:$0xf]
        %v781 = vld [vmem:[%s1 + $0x158] sm:$0xf]
        %v782 = vld [vmem:[%s1 + $0x15c] sm:$0xf]
        %v783 = vld [vmem:[%s1 + $0x160] sm:$0xf]
        %v784 = vld [vmem:[%s1 + $0x164] sm:$0xf]
        %v785 = vld [vmem:[%s1 + $0x168] sm:$0xf]
        %v786 = vld [vmem:[%s1 + $0x16c] sm:$0xf]
        %v787 = vld [vmem:[%s1 + $0x170] sm:$0xf]
        %v788 = vld [vmem:[%s1 + $0x174] sm:$0xf]
        %v789 = vld [vmem:[%s1 + $0x178] sm:$0xf]
        %v790 = vld [vmem:[%s1 + $0x17c] sm:$0xf]
        %v791 = vld [vmem:[%s1 + $0x180] sm:$0xf]
        %v792 = vld [vmem:[%s1 + $0x184] sm:$0xf]
        %v793 = vld [vmem:[%s1 + $0x188] sm:$0xf]
        %v794 = vld [vmem:[%s1 + $0x18c] sm:$0xf]
        %v795 = vld [vmem:[%s1 + $0x190] sm:$0xf]
        %v796 = vld [vmem:[%s1 + $0x194] sm:$0xf]
        %v797 = vld [vmem:[%s1 + $0x198] sm:$0xf]
        %v798 = vld [vmem:[%s1 + $0x19c] sm:$0xf]
        %v799 = vld [vmem:[%s1 + $0x1a0] sm:$0xf]
        %v800 = vld [vmem:[%s1 + $0x1a4] sm:$0xf]
        %v801 = vld [vmem:[%s1 + $0x1a8] sm:$0xf]
        %v802 = vld [vmem:[%s1 + $0x1ac] sm:$0xf]
        %v803 = vld [vmem:[%s1 + $0x1b0] sm:$0xf]
        %v804 = vld [vmem:[%s1 + $0x1b4] sm:$0xf]
        %v805 = vld [vmem:[%s1 + $0x1b8] sm:$0xf]
        %v806 = vld [vmem:[%s1 + $0x1bc] sm:$0xf]
        %v807 = vld [vmem:[%s1 + $0x1c0] sm:$0xf]
        %v808 = vld [vmem:[%s1 + $0x1c4] sm:$0xf]
        %v809 = vld [vmem:[%s1 + $0x1c8] sm:$0xf]
        %v810 = vld [vmem:[%s1 + $0x1cc] sm:$0xf]
        %v811 = vld [vmem:[%s1 + $0x1d0] sm:$0xf]
        %v812 = vld [vmem:[%s1 + $0x1d4] sm:$0xf]
        %v813 = vld [vmem:[%s1 + $0x1d8] sm:$0xf]
        %v814 = vld [vmem:[%s1 + $0x1dc] sm:$0xf]
        %v815 = vld [vmem:[%s1 + $0x1e0] sm:$0xf]
        %v816 = vld [vmem:[%s1 + $0x1e4] sm:$0xf]
        %v817 = vld [vmem:[%s1 + $0x1e8] sm:$0xf]
        %v818 = vld [vmem:[%s1 + $0x1ec] sm:$0xf]
        %v819 = vld [vmem:[%s1 + $0x1f0] sm:$0xf]
        %v820 = vld [vmem:[%s1 + $0x1f4] sm:$0xf]
        %v821 = vld [vmem:[%s1 + $0x1f8] sm:$0xf]
        %v822 = vld [vmem:[%s1 + $0x1fc] sm:$0xf]
        %v823 = vld [vmem:[%s1 + $0x200] sm:$0xf]
        %v824 = vld [vmem:[%s1 + $0x204] sm:$0xf]
        %v825 = vld [vmem:[%s1 + $0x208] sm:$0xf]
        %v826 = vld [vmem:[%s1 + $0x20c] sm:$0xf]
        %v827 = vld [vmem:[%s1 + $0x210] sm:$0xf]
        %v828 = vld [vmem:[%s1 + $0x214] sm:$0xf]
        %v829 = vld [vmem:[%s1 + $0x218] sm:$0xf]
        %v830 = vld [vmem:[%s1 + $0x21c] sm:$0xf]
        %v831 = vld [vmem:[%s1 + $0x220] sm:$0xf]
        %v832 = vld [vmem:[%s1 + $0x224] sm:$0xf]
        %v833 = vld [vmem:[%s1 + $0x228] sm:$0xf]
        %v834 = vld [vmem:[%s1 + $0x22c] sm:$0xf]
        %v835 = vld [vmem:[%s1 + $0x230] sm:$0xf]
        %v836 = vld [vmem:[%s1 + $0x234] sm:$0xf]
        %v837 = vld [vmem:[%s1 + $0x238] sm:$0xf]
        %v838 = vld [vmem:[%s1 + $0x23c] sm:$0xf]
        %v839 = vld [vmem:[%s2] sm:$0x1]
        %v841 = vlaneseq
        %v842 = vshrl.u32 %v841, 7
        %v843 = vsub.s32 0, %v842
        %v844 = vrot.slane %v839, %v843
        %v990 = vunpack.c.l.b16 %v695
        %v991 = vunpack.c.l.b16 %v696
        %v992 = vunpack.c.l.b16 %v697
        %v993 = vunpack.c.l.b16 %v698
        %v994 = vunpack.c.l.b16 %v699
        %v995 = vunpack.c.l.b16 %v700
        %v996 = vunpack.c.l.b16 %v701
        %v997 = vunpack.c.l.b16 %v702
        %v998 = vunpack.c.l.b16 %v703
        %v999 = vunpack.c.l.b16 %v704
        %v1000 = vunpack.c.l.b16 %v705
        %v1001 = vunpack.c.l.b16 %v706
        %v1002 = vunpack.c.l.b16 %v707
        %v1003 = vunpack.c.l.b16 %v708
        %v1004 = vunpack.c.l.b16 %v709
        %v1005 = vunpack.c.l.b16 %v710
        %v1006 = vunpack.c.l.b16 %v711
        %v1007 = vunpack.c.l.b16 %v712
        %v1008 = vunpack.c.l.b16 %v713
        %v1009 = vunpack.c.l.b16 %v714
        %v1010 = vunpack.c.l.b16 %v715
        %v1011 = vunpack.c.l.b16 %v716
        %v1012 = vunpack.c.l.b16 %v717
        %v1013 = vunpack.c.l.b16 %v718
        %v1014 = vunpack.c.l.b16 %v719
        %v1015 = vunpack.c.l.b16 %v720
        %v1016 = vunpack.c.l.b16 %v721
        %v1017 = vunpack.c.l.b16 %v722
        %v1018 = vunpack.c.l.b16 %v723
        %v1019 = vunpack.c.l.b16 %v724
        %v1020 = vunpack.c.l.b16 %v725
        %v1021 = vunpack.c.l.b16 %v726
        %v1022 = vunpack.c.l.b16 %v727
        %v1023 = vunpack.c.l.b16 %v728
        %v1024 = vunpack.c.l.b16 %v729
        %v1025 = vunpack.c.l.b16 %v730
        %v1026 = vunpack.c.l.b16 %v731
        %v1027 = vunpack.c.l.b16 %v732
        %v1028 = vunpack.c.l.b16 %v733
        %v1029 = vunpack.c.l.b16 %v734
        %v1030 = vunpack.c.l.b16 %v735
        %v1031 = vunpack.c.l.b16 %v736
        %v1032 = vunpack.c.l.b16 %v737
        %v1033 = vunpack.c.l.b16 %v738
        %v1034 = vunpack.c.l.b16 %v739
        %v1035 = vunpack.c.l.b16 %v740
        %v1036 = vunpack.c.l.b16 %v741
        %v1037 = vunpack.c.l.b16 %v742
        %v1038 = vunpack.c.l.b16 %v743
        %v1039 = vunpack.c.l.b16 %v744
        %v1040 = vunpack.c.l.b16 %v745
        %v1041 = vunpack.c.l.b16 %v746
        %v1042 = vunpack.c.l.b16 %v747
        %v1043 = vunpack.c.l.b16 %v748
        %v1044 = vunpack.c.l.b16 %v749
        %v1045 = vunpack.c.l.b16 %v750
        %v1046 = vunpack.c.l.b16 %v751
        %v1047 = vunpack.c.l.b16 %v752
        %v1048 = vunpack.c.l.b16 %v753
        %v1049 = vunpack.c.l.b16 %v754
        %v1050 = vunpack.c.l.b16 %v755
        %v1051 = vunpack.c.l.b16 %v756
        %v1052 = vunpack.c.l.b16 %v757
        %v1053 = vunpack.c.l.b16 %v758
        %v1054 = vunpack.c.l.b16 %v759
        %v1055 = vunpack.c.l.b16 %v760
        %v1056 = vunpack.c.l.b16 %v761
        %v1057 = vunpack.c.l.b16 %v762
        %v1058 = vunpack.c.l.b16 %v763
        %v1059 = vunpack.c.l.b16 %v764
        %v1060 = vunpack.c.l.b16 %v765
        %v1061 = vunpack.c.l.b16 %v766
        %v1062 = vunpack.c.l.b16 %v767
        %v1063 = vunpack.c.l.b16 %v768
        %v1064 = vunpack.c.l.b16 %v769
        %v1065 = vunpack.c.l.b16 %v770
        %v1066 = vunpack.c.l.b16 %v771
        %v1067 = vunpack.c.l.b16 %v772
        %v1068 = vunpack.c.l.b16 %v773
        %v1069 = vunpack.c.l.b16 %v774
        %v1070 = vunpack.c.l.b16 %v775
        %v1071 = vunpack.c.l.b16 %v776
        %v1072 = vunpack.c.l.b16 %v777
        %v1073 = vunpack.c.l.b16 %v778
        %v1074 = vunpack.c.l.b16 %v779
        %v1075 = vunpack.c.l.b16 %v780
        %v1076 = vunpack.c.l.b16 %v781
        %v1077 = vunpack.c.l.b16 %v782
        %v1078 = vunpack.c.l.b16 %v783
        %v1079 = vunpack.c.l.b16 %v784
        %v1080 = vunpack.c.l.b16 %v785
        %v1081 = vunpack.c.l.b16 %v786
        %v1082 = vunpack.c.l.b16 %v787
        %v1083 = vunpack.c.l.b16 %v788
        %v1084 = vunpack.c.l.b16 %v789
        %v1085 = vunpack.c.l.b16 %v790
        %v1086 = vunpack.c.l.b16 %v791
        %v1087 = vunpack.c.l.b16 %v792
        %v1088 = vunpack.c.l.b16 %v793
        %v1089 = vunpack.c.l.b16 %v794
        %v1090 = vunpack.c.l.b16 %v795
        %v1091 = vunpack.c.l.b16 %v796
        %v1092 = vunpack.c.l.b16 %v797
        %v1093 = vunpack.c.l.b16 %v798
        %v1094 = vunpack.c.l.b16 %v799
        %v1095 = vunpack.c.l.b16 %v800
        %v1096 = vunpack.c.l.b16 %v801
        %v1097 = vunpack.c.l.b16 %v802
        %v1098 = vunpack.c.l.b16 %v803
        %v1099 = vunpack.c.l.b16 %v804
        %v1100 = vunpack.c.l.b16 %v805
        %v1101 = vunpack.c.l.b16 %v806
        %v1102 = vunpack.c.l.b16 %v807
        %v1103 = vunpack.c.l.b16 %v808
        %v1104 = vunpack.c.l.b16 %v809
        %v1105 = vunpack.c.l.b16 %v810
        %v1106 = vunpack.c.l.b16 %v811
        %v1107 = vunpack.c.l.b16 %v812
        %v1108 = vunpack.c.l.b16 %v813
        %v1109 = vunpack.c.l.b16 %v814
        %v1110 = vunpack.c.l.b16 %v815
        %v1111 = vunpack.c.l.b16 %v816
        %v1112 = vunpack.c.l.b16 %v817
        %v1113 = vunpack.c.l.b16 %v818
        %v1114 = vunpack.c.l.b16 %v819
        %v1115 = vunpack.c.l.b16 %v820
        %v1116 = vunpack.c.l.b16 %v821
        %v1117 = vunpack.c.l.b16 %v822
        %v1118 = vunpack.c.l.b16 %v823
        %v1119 = vunpack.c.l.b16 %v824
        %v1120 = vunpack.c.l.b16 %v825
        %v1121 = vunpack.c.l.b16 %v826
        %v1122 = vunpack.c.l.b16 %v827
        %v1123 = vunpack.c.l.b16 %v828
        %v1124 = vunpack.c.l.b16 %v829
        %v1125 = vunpack.c.l.b16 %v830
        %v1126 = vunpack.c.l.b16 %v831
        %v1127 = vunpack.c.l.b16 %v832
        %v1128 = vunpack.c.l.b16 %v833
        %v1129 = vunpack.c.l.b16 %v834
        %v1130 = vunpack.c.l.b16 %v835
        %v1131 = vunpack.c.l.b16 %v836
        %v1132 = vunpack.c.l.b16 %v837
        %v1133 = vunpack.c.l.b16 %v838
        %v1134 = vpack.c.b16 %v991, %v990
        %v1135 = vpack.c.b16 %v993, %v992
        %v1136 = vpack.c.b16 %v995, %v994
        %v1137 = vpack.c.b16 %v997, %v996
        %v1138 = vpack.c.b16 %v999, %v998
        %v1139 = vpack.c.b16 %v1001, %v1000
        %v1140 = vpack.c.b16 %v1003, %v1002
        %v1141 = vpack.c.b16 %v1005, %v1004
        %v1142 = vpack.c.b16 %v1007, %v1006
        %v1143 = vpack.c.b16 %v1009, %v1008
        %v1144 = vpack.c.b16 %v1011, %v1010
        %v1145 = vpack.c.b16 %v1013, %v1012
        %v1146 = vpack.c.b16 %v1015, %v1014
        %v1147 = vpack.c.b16 %v1017, %v1016
        %v1148 = vpack.c.b16 %v1019, %v1018
        %v1149 = vpack.c.b16 %v1021, %v1020
        %v1150 = vpack.c.b16 %v1023, %v1022
        %v1151 = vpack.c.b16 %v1025, %v1024
        %v1152 = vpack.c.b16 %v1027, %v1026
        %v1153 = vpack.c.b16 %v1029, %v1028
        %v1154 = vpack.c.b16 %v1031, %v1030
        %v1155 = vpack.c.b16 %v1033, %v1032
        %v1156 = vpack.c.b16 %v1035, %v1034
        %v1157 = vpack.c.b16 %v1037, %v1036
        %v1158 = vpack.c.b16 %v1039, %v1038
        %v1159 = vpack.c.b16 %v1041, %v1040
        %v1160 = vpack.c.b16 %v1043, %v1042
        %v1161 = vpack.c.b16 %v1045, %v1044
        %v1162 = vpack.c.b16 %v1047, %v1046
        %v1163 = vpack.c.b16 %v1049, %v1048
        %v1164 = vpack.c.b16 %v1051, %v1050
        %v1165 = vpack.c.b16 %v1053, %v1052
        %v1166 = vpack.c.b16 %v1055, %v1054
        %v1167 = vpack.c.b16 %v1057, %v1056
        %v1168 = vpack.c.b16 %v1059, %v1058
        %v1169 = vpack.c.b16 %v1061, %v1060
        %v1170 = vpack.c.b16 %v1063, %v1062
        %v1171 = vpack.c.b16 %v1065, %v1064
        %v1172 = vpack.c.b16 %v1067, %v1066
        %v1173 = vpack.c.b16 %v1069, %v1068
        %v1174 = vpack.c.b16 %v1071, %v1070
        %v1175 = vpack.c.b16 %v1073, %v1072
        %v1176 = vpack.c.b16 %v1075, %v1074
        %v1177 = vpack.c.b16 %v1077, %v1076
        %v1178 = vpack.c.b16 %v1079, %v1078
        %v1179 = vpack.c.b16 %v1081, %v1080
        %v1180 = vpack.c.b16 %v1083, %v1082
        %v1181 = vpack.c.b16 %v1085, %v1084
        %v1182 = vpack.c.b16 %v1087, %v1086
        %v1183 = vpack.c.b16 %v1089, %v1088
        %v1184 = vpack.c.b16 %v1091, %v1090
        %v1185 = vpack.c.b16 %v1093, %v1092
        %v1186 = vpack.c.b16 %v1095, %v1094
        %v1187 = vpack.c.b16 %v1097, %v1096
        %v1188 = vpack.c.b16 %v1099, %v1098
        %v1189 = vpack.c.b16 %v1101, %v1100
        %v1190 = vpack.c.b16 %v1103, %v1102
        %v1191 = vpack.c.b16 %v1105, %v1104
        %v1192 = vpack.c.b16 %v1107, %v1106
        %v1193 = vpack.c.b16 %v1109, %v1108
        %v1194 = vpack.c.b16 %v1111, %v1110
        %v1195 = vpack.c.b16 %v1113, %v1112
        %v1196 = vpack.c.b16 %v1115, %v1114
        %v1197 = vpack.c.b16 %v1117, %v1116
        %v1198 = vpack.c.b16 %v1119, %v1118
        %v1199 = vpack.c.b16 %v1121, %v1120
        %v1200 = vpack.c.b16 %v1123, %v1122
        %v1201 = vpack.c.b16 %v1125, %v1124
        %v1202 = vpack.c.b16 %v1127, %v1126
        %v1203 = vpack.c.b16 %v1129, %v1128
        %v1204 = vpack.c.b16 %v1131, %v1130
        %v1205 = vpack.c.b16 %v1133, %v1132
        %1278 = vmatprep.subr.bf16.mxu0 0
        %1279 = vmatpush1.bf16.msra.mxu0 %v1134
        %1280 = vmatprep.subr.bf16.mxu0 0
        %1281 = vmatpush1.bf16.msra.mxu0 %v1135
        %1282 = vmatprep.subr.bf16.mxu0 0
        %1283 = vmatpush1.bf16.msra.mxu0 %v1136
        %1284 = vmatprep.subr.bf16.mxu0 0
        %1285 = vmatpush1.bf16.msra.mxu0 %v1137
        %1286 = vmatprep.subr.bf16.mxu0 0
        %1287 = vmatpush1.bf16.msra.mxu0 %v1138
        %1288 = vmatprep.subr.bf16.mxu0 0
        %1289 = vmatpush1.bf16.msra.mxu0 %v1139
        %1290 = vmatprep.subr.bf16.mxu0 0
        %1291 = vmatpush1.bf16.msra.mxu0 %v1140
        %1292 = vmatprep.subr.bf16.mxu0 0
        %1293 = vmatpush1.bf16.msra.mxu0 %v1141
        %1294 = vmatprep.subr.bf16.mxu0 0
        %1295 = vmatpush1.bf16.msra.mxu0 %v1142
        %1296 = vmatprep.subr.bf16.mxu0 0
        %1297 = vmatpush1.bf16.msra.mxu0 %v1143
        %1298 = vmatprep.subr.bf16.mxu0 0
        %1299 = vmatpush1.bf16.msra.mxu0 %v1144
        %1300 = vmatprep.subr.bf16.mxu0 0
        %1301 = vmatpush1.bf16.msra.mxu0 %v1145
        %1302 = vmatprep.subr.bf16.mxu0 0
        %1303 = vmatpush1.bf16.msra.mxu0 %v1146
        %1304 = vmatprep.subr.bf16.mxu0 0
        %1305 = vmatpush1.bf16.msra.mxu0 %v1147
        %1306 = vmatprep.subr.bf16.mxu0 0
        %1307 = vmatpush1.bf16.msra.mxu0 %v1148
        %1308 = vmatprep.subr.bf16.mxu0 0
        %1309 = vmatpush1.bf16.msra.mxu0 %v1149
        %1310 = vmatprep.mubr.bf16.mxu0 %v623
        %1311 = vmatmul.mubr.bf16.gmra.mrb[0].mxu0 %v591
        %v1312 = vpop.f32.mrb[0].mxu0
        %v1313 = vadd.f32 %v844, %v1312
        %v1314 = vpop.f32.mrb[0].mxu0
        %v1315 = vpop.f32.mrb[0].mxu0
        %v1316 = vadd.f32 %v844, %v1315
        %v1317 = vpop.f32.mrb[0].mxu0
        %1318 = vmatprep.mubr.bf16.mxu0 %v624
        %1319 = vmatmul.mubr.bf16.gmra.mrb[0].mxu0 %v592
        %v1320 = vpop.f32.mrb[0].mxu0
        %v1321 = vadd.f32 %v844, %v1320
        %v1322 = vpop.f32.mrb[0].mxu0
        %v1323 = vpop.f32.mrb[0].mxu0
        %v1324 = vadd.f32 %v844, %v1323
        %v1325 = vpop.f32.mrb[0].mxu0
        %1326 = vmatprep.mubr.bf16.mxu0 %v625
        %1327 = vmatmul.mubr.bf16.gmra.mrb[0].mxu0 %v593
        %v1328 = vpop.f32.mrb[0].mxu0
        %v1329 = vadd.f32 %v844, %v1328
        %v1330 = vpop.f32.mrb[0].mxu0
        %v1331 = vpop.f32.mrb[0].mxu0
        %v1332 = vadd.f32 %v844, %v1331
        %v1333 = vpop.f32.mrb[0].mxu0
        %1334 = vmatprep.mubr.bf16.mxu0 %v626
        %1335 = vmatmul.mubr.bf16.gmra.mrb[0].mxu0 %v594
        %v1336 = vpop.f32.mrb[0].mxu0
        %v1337 = vadd.f32 %v844, %v1336
        %v1338 = vpop.f32.mrb[0].mxu0
        %v1339 = vpop.f32.mrb[0].mxu0
        %v1340 = vadd.f32 %v844, %v1339
        %v1341 = vpop.f32.mrb[0].mxu0
        %1342 = vmatprep.mubr.bf16.mxu0 %v627
        %1343 = vmatmul.mubr.bf16.gmra.mrb[0].mxu0 %v595
        %v1344 = vpop.f32.mrb[0].mxu0
        %v1345 = vadd.f32 %v844, %v1344
        %v1346 = vpop.f32.mrb[0].mxu0
        %v1347 = vpop.f32.mrb[0].mxu0
        %v1348 = vadd.f32 %v844, %v1347
        %v1349 = vpop.f32.mrb[0].mxu0
        %1350 = vmatprep.mubr.bf16.mxu0 %v628
        %1351 = vmatmul.mubr.bf16.gmra.mrb[0].mxu0 %v596
        %v1352 = vpop.f32.mrb[0].mxu0
        %v1353 = vadd.f32 %v844, %v1352
        %v1354 = vpop.f32.mrb[0].mxu0
        %v1355 = vpop.f32.mrb[0].mxu0
        %v1356 = vadd.f32 %v844, %v1355
        %v1357 = vpop.f32.mrb[0].mxu0
        %1358 = vmatprep.mubr.bf16.mxu0 %v629
        %1359 = vmatmul.mubr.bf16.gmra.mrb[0].mxu0 %v597
        %v1360 = vpop.f32.mrb[0].mxu0
        %v1361 = vadd.f32 %v844, %v1360
        %v1362 = vpop.f32.mrb[0].mxu0
        %v1363 = vpop.f32.mrb[0].mxu0
        %v1364 = vadd.f32 %v844, %v1363
        %v1365 = vpop.f32.mrb[0].mxu0
        %1366 = vmatprep.mubr.bf16.mxu0 %v630
        %1367 = vmatmul.mubr.bf16.gmra.mrb[0].mxu0 %v598
        %v1368 = vpop.f32.mrb[0].mxu0
        %v1369 = vadd.f32 %v844, %v1368
        %v1370 = vpop.f32.mrb[0].mxu0
        %v1371 = vpop.f32.mrb[0].mxu0
        %v1372 = vadd.f32 %v844, %v1371
        %v1373 = vpop.f32.mrb[0].mxu0
        %1374 = vdwg.mxu0
        %1375 = vmatprep.subr.bf16.mxu0 0
        %1376 = vmatpush1.bf16.msra.mxu0 %v1150
        %1377 = vmatprep.subr.bf16.mxu0 0
        %1378 = vmatpush1.bf16.msra.mxu0 %v1151
        %1379 = vmatprep.subr.bf16.mxu0 0
        %1380 = vmatpush1.bf16.msra.mxu0 %v1152
        %1381 = vmatprep.subr.bf16.mxu0 0
        %1382 = vmatpush1.bf16.msra.mxu0 %v1153
        %1383 = vmatprep.subr.bf16.mxu0 0
        %1384 = vmatpush1.bf16.msra.mxu0 %v1154
        %1385 = vmatprep.subr.bf16.mxu0 0
        %1386 = vmatpush1.bf16.msra.mxu0 %v1155
        %1387 = vmatprep.subr.bf16.mxu0 0
        %1388 = vmatpush1.bf16.msra.mxu0 %v1156
        %1389 = vmatprep.subr.bf16.mxu0 0
        %1390 = vmatpush1.bf16.msra.mxu0 %v1157
        %1391 = vmatprep.subr.bf16.mxu0 0
        %1392 = vmatpush1.bf16.msra.mxu0 %v1158
        %1393 = vmatprep.subr.bf16.mxu0 0
        %1394 = vmatpush1.bf16.msra.mxu0 %v1159
        %1395 = vmatprep.subr.bf16.mxu0 0
        %1396 = vmatpush1.bf16.msra.mxu0 %v1160
        %1397 = vmatprep.subr.bf16.mxu0 0
        %1398 = vmatpush1.bf16.msra.mxu0 %v1161
        %1399 = vmatprep.subr.bf16.mxu0 0
        %1400 = vmatpush1.bf16.msra.mxu0 %v1162
        %1401 = vmatprep.subr.bf16.mxu0 0
        %1402 = vmatpush1.bf16.msra.mxu0 %v1163
        %1403 = vmatprep.subr.bf16.mxu0 0
        %1404 = vmatpush1.bf16.msra.mxu0 %v1164
        %1405 = vmatprep.subr.bf16.mxu0 0
        %1406 = vmatpush1.bf16.msra.mxu0 %v1165
        %1407 = vmatprep.mubr.bf16.mxu0 %v592
        %1408 = vmatmul.mubr.bf16.gmra.mrb[0].mxu0 %v655
        %v1409 = vpop.f32.mrb[0].mxu0
        %v1410 = vadd.f32 %v1313, %v1409
        %v1411 = vpop.f32.mrb[0].mxu0
        %v1412 = vpop.f32.mrb[0].mxu0
        %v1413 = vadd.f32 %v1316, %v1412
        %v1414 = vpop.f32.mrb[0].mxu0
        %1415 = vmatprep.mubr.bf16.mxu0 %v593
        %1416 = vmatmul.mubr.bf16.gmra.mrb[0].mxu0 %v656
        %v1417 = vpop.f32.mrb[0].mxu0
        %v1418 = vadd.f32 %v1321, %v1417
        %v1419 = vpop.f32.mrb[0].mxu0
        %v1420 = vpop.f32.mrb[0].mxu0
        %v1421 = vadd.f32 %v1324, %v1420
        %v1422 = vpop.f32.mrb[0].mxu0
        %1423 = vmatprep.mubr.bf16.mxu0 %v594
        %1424 = vmatmul.mubr.bf16.gmra.mrb[0].mxu0 %v657
        %v1425 = vpop.f32.mrb[0].mxu0
        %v1426 = vadd.f32 %v1329, %v1425
        %v1427 = vpop.f32.mrb[0].mxu0
        %v1428 = vpop.f32.mrb[0].mxu0
        %v1429 = vadd.f32 %v1332, %v1428
        %v1430 = vpop.f32.mrb[0].mxu0
        %1431 = vmatprep.mubr.bf16.mxu0 %v595
        %1432 = vmatmul.mubr.bf16.gmra.mrb[0].mxu0 %v658
        %v1433 = vpop.f32.mrb[0].mxu0
        %v1434 = vadd.f32 %v1337, %v1433
        %v1435 = vpop.f32.mrb[0].mxu0
        %v1436 = vpop.f32.mrb[0].mxu0
        %v1437 = vadd.f32 %v1340, %v1436
        %v1438 = vpop.f32.mrb[0].mxu0
        %1439 = vmatprep.mubr.bf16.mxu0 %v596
        %1440 = vmatmul.mubr.bf16.gmra.mrb[0].mxu0 %v659
        %v1441 = vpop.f32.mrb[0].mxu0
        %v1442 = vadd.f32 %v1345, %v1441
        %v1443 = vpop.f32.mrb[0].mxu0
        %v1444 = vpop.f32.mrb[0].mxu0
        %v1445 = vadd.f32 %v1348, %v1444
        %v1446 = vpop.f32.mrb[0].mxu0
        %1447 = vmatprep.mubr.bf16.mxu0 %v597
        %1448 = vmatmul.mubr.bf16.gmra.mrb[0].mxu0 %v660
        %v1449 = vpop.f32.mrb[0].mxu0
        %v1450 = vadd.f32 %v1353, %v1449
        %v1451 = vpop.f32.mrb[0].mxu0
        %v1452 = vpop.f32.mrb[0].mxu0
        %v1453 = vadd.f32 %v1356, %v1452
        %v1454 = vpop.f32.mrb[0].mxu0
        %1455 = vmatprep.mubr.bf16.mxu0 %v598
        %1456 = vmatmul.mubr.bf16.gmra.mrb[0].mxu0 %v661
        %v1457 = vpop.f32.mrb[0].mxu0
        %v1458 = vadd.f32 %v1361, %v1457
        %v1459 = vpop.f32.mrb[0].mxu0
        %v1460 = vpop.f32.mrb[0].mxu0
        %v1461 = vadd.f32 %v1364, %v1460
        %v1462 = vpop.f32.mrb[0].mxu0
        %1463 = vmatprep.mubr.bf16.mxu0 %v673
        %1464 = vmatmul.mubr.bf16.gmra.mrb[0].mxu0 %v662
        %v1465 = vpop.f32.mrb[0].mxu0
        %v1466 = vadd.f32 %v1369, %v1465
        %v1467 = vpop.f32.mrb[0].mxu0
        %v1468 = vpop.f32.mrb[0].mxu0
        %v1469 = vadd.f32 %v1372, %v1468
        %v1470 = vpop.f32.mrb[0].mxu0
        %1471 = vdwg.mxu0
        %1472 = vmatprep.subr.bf16.mxu0 0
        %1473 = vmatpush1.bf16.msra.mxu0 %v1166
        %1474 = vmatprep.subr.bf16.mxu0 0
        %1475 = vmatpush1.bf16.msra.mxu0 %v1167
        %1476 = vmatprep.subr.bf16.mxu0 0
        %1477 = vmatpush1.bf16.msra.mxu0 %v1168
        %1478 = vmatprep.subr.bf16.mxu0 0
        %1479 = vmatpush1.bf16.msra.mxu0 %v1169
        %1480 = vmatprep.subr.bf16.mxu0 0
        %1481 = vmatpush1.bf16.msra.mxu0 %v1170
        %1482 = vmatprep.subr.bf16.mxu0 0
        %1483 = vmatpush1.bf16.msra.mxu0 %v1171
        %1484 = vmatprep.subr.bf16.mxu0 0
        %1485 = vmatpush1.bf16.msra.mxu0 %v1172
        %1486 = vmatprep.subr.bf16.mxu0 0
        %1487 = vmatpush1.bf16.msra.mxu0 %v1173
        %1488 = vmatprep.subr.bf16.mxu0 0
        %1489 = vmatpush1.bf16.msra.mxu0 %v1174
        %1490 = vmatprep.subr.bf16.mxu0 0
        %1491 = vmatpush1.bf16.msra.mxu0 %v1175
        %1492 = vmatprep.subr.bf16.mxu0 0
        %1493 = vmatpush1.bf16.msra.mxu0 %v1176
        %1494 = vmatprep.subr.bf16.mxu0 0
        %1495 = vmatpush1.bf16.msra.mxu0 %v1177
        %1496 = vmatprep.subr.bf16.mxu0 0
        %1497 = vmatpush1.bf16.msra.mxu0 %v1178
        %1498 = vmatprep.subr.bf16.mxu0 0
        %1499 = vmatpush1.bf16.msra.mxu0 %v1179
        %1500 = vmatprep.subr.bf16.mxu0 0
        %1501 = vmatpush1.bf16.msra.mxu0 %v1180
        %1502 = vmatprep.subr.bf16.mxu0 0
        %1503 = vmatpush1.bf16.msra.mxu0 %v1181
        %1504 = vmatprep.mubr.bf16.mxu0 %v656
        %1505 = vmatmul.mubr.bf16.gmra.mrb[0].mxu0 %v624
        %v1506 = vpop.f32.mrb[0].mxu0
        %v1507 = vadd.f32 %v1410, %v1506
        %v1508 = vpop.f32.mrb[0].mxu0
        %v1509 = vpop.f32.mrb[0].mxu0
        %v1510 = vadd.f32 %v1413, %v1509
        %v1511 = vpop.f32.mrb[0].mxu0
        %1512 = vmatprep.mubr.bf16.mxu0 %v657
        %1513 = vmatmul.mubr.bf16.gmra.mrb[0].mxu0 %v625
        %v1514 = vpop.f32.mrb[0].mxu0
        %v1515 = vadd.f32 %v1418, %v1514
        %v1516 = vpop.f32.mrb[0].mxu0
        %v1517 = vpop.f32.mrb[0].mxu0
        %v1518 = vadd.f32 %v1421, %v1517
        %v1519 = vpop.f32.mrb[0].mxu0
        %1520 = vmatprep.mubr.bf16.mxu0 %v658
        %1521 = vmatmul.mubr.bf16.gmra.mrb[0].mxu0 %v626
        %v1522 = vpop.f32.mrb[0].mxu0
        %v1523 = vadd.f32 %v1426, %v1522
        %v1524 = vpop.f32.mrb[0].mxu0
        %v1525 = vpop.f32.mrb[0].mxu0
        %v1526 = vadd.f32 %v1429, %v1525
        %v1527 = vpop.f32.mrb[0].mxu0
        %1528 = vmatprep.mubr.bf16.mxu0 %v659
        %1529 = vmatmul.mubr.bf16.gmra.mrb[0].mxu0 %v627
        %v1530 = vpop.f32.mrb[0].mxu0
        %v1531 = vadd.f32 %v1434, %v1530
        %v1532 = vpop.f32.mrb[0].mxu0
        %v1533 = vpop.f32.mrb[0].mxu0
        %v1534 = vadd.f32 %v1437, %v1533
        %v1535 = vpop.f32.mrb[0].mxu0
        %1536 = vmatprep.mubr.bf16.mxu0 %v660
        %1537 = vmatmul.mubr.bf16.gmra.mrb[0].mxu0 %v628
        %v1538 = vpop.f32.mrb[0].mxu0
        %v1539 = vadd.f32 %v1442, %v1538
        %v1540 = vpop.f32.mrb[0].mxu0
        %v1541 = vpop.f32.mrb[0].mxu0
        %v1542 = vadd.f32 %v1445, %v1541
        %v1543 = vpop.f32.mrb[0].mxu0
        %1544 = vmatprep.mubr.bf16.mxu0 %v661
        %1545 = vmatmul.mubr.bf16.gmra.mrb[0].mxu0 %v629
        %v1546 = vpop.f32.mrb[0].mxu0
        %v1547 = vadd.f32 %v1450, %v1546
        %v1548 = vpop.f32.mrb[0].mxu0
        %v1549 = vpop.f32.mrb[0].mxu0
        %v1550 = vadd.f32 %v1453, %v1549
        %v1551 = vpop.f32.mrb[0].mxu0
        %1552 = vmatprep.mubr.bf16.mxu0 %v662
        %1553 = vmatmul.mubr.bf16.gmra.mrb[0].mxu0 %v630
        %v1554 = vpop.f32.mrb[0].mxu0
        %v1555 = vadd.f32 %v1458, %v1554
        %v1556 = vpop.f32.mrb[0].mxu0
        %v1557 = vpop.f32.mrb[0].mxu0
        %v1558 = vadd.f32 %v1461, %v1557
        %v1559 = vpop.f32.mrb[0].mxu0
        %1560 = vmatprep.mubr.bf16.mxu0 %v681
        %1561 = vmatmul.mubr.bf16.gmra.mrb[0].mxu0 %v677
        %v1562 = vpop.f32.mrb[0].mxu0
        %v1563 = vadd.f32 %v1466, %v1562
        %v1564 = vpop.f32.mrb[0].mxu0
        %v1565 = vpop.f32.mrb[0].mxu0
        %v1566 = vadd.f32 %v1469, %v1565
        %v1567 = vpop.f32.mrb[0].mxu0
        %1568 = vdwg.mxu0
        %1569 = vmatprep.subr.bf16.mxu0 0
        %1570 = vmatpush1.bf16.msra.mxu0 %v1182
        %1571 = vmatprep.subr.bf16.mxu0 0
        %1572 = vmatpush1.bf16.msra.mxu0 %v1183
        %1573 = vmatprep.subr.bf16.mxu0 0
        %1574 = vmatpush1.bf16.msra.mxu0 %v1184
        %1575 = vmatprep.subr.bf16.mxu0 0
        %1576 = vmatpush1.bf16.msra.mxu0 %v1185
        %1577 = vmatprep.subr.bf16.mxu0 0
        %1578 = vmatpush1.bf16.msra.mxu0 %v1186
        %1579 = vmatprep.subr.bf16.mxu0 0
        %1580 = vmatpush1.bf16.msra.mxu0 %v1187
        %1581 = vmatprep.subr.bf16.mxu0 0
        %1582 = vmatpush1.bf16.msra.mxu0 %v1188
        %1583 = vmatprep.subr.bf16.mxu0 0
        %1584 = vmatpush1.bf16.msra.mxu0 %v1189
        %1585 = vmatprep.subr.bf16.mxu0 0
        %1586 = vmatpush1.bf16.msra.mxu0 %v1190
        %1587 = vmatprep.subr.bf16.mxu0 0
        %1588 = vmatpush1.bf16.msra.mxu0 %v1191
        %1589 = vmatprep.subr.bf16.mxu0 0
        %1590 = vmatpush1.bf16.msra.mxu0 %v1192
        %1591 = vmatprep.subr.bf16.mxu0 0
        %1592 = vmatpush1.bf16.msra.mxu0 %v1193
        %1593 = vmatprep.subr.bf16.mxu0 0
        %1594 = vmatpush1.bf16.msra.mxu0 %v1194
        %1595 = vmatprep.subr.bf16.mxu0 0
        %1596 = vmatpush1.bf16.msra.mxu0 %v1195
        %1597 = vmatprep.subr.bf16.mxu0 0
        %1598 = vmatpush1.bf16.msra.mxu0 %v1196
        %1599 = vmatprep.subr.bf16.mxu0 0
        %1600 = vmatpush1.bf16.msra.mxu0 %v1197
        %1601 = vmatprep.mubr.bf16.mxu0 %v625
        %1602 = vmatmul.mubr.bf16.gmra.mrb[0].mxu0 %v593
        %v1603 = vpop.f32.mrb[0].mxu0
        %v1604 = vadd.f32 %v1507, %v1603
        %v1605 = vpop.f32.mrb[0].mxu0
        %v1606 = vpop.f32.mrb[0].mxu0
        %v1607 = vadd.f32 %v1510, %v1606
        %v1608 = vpop.f32.mrb[0].mxu0
        %1609 = vmatprep.mubr.bf16.mxu0 %v626
        %1610 = vmatmul.mubr.bf16.gmra.mrb[0].mxu0 %v594
        %v1611 = vpop.f32.mrb[0].mxu0
        %v1612 = vadd.f32 %v1515, %v1611
        %v1613 = vpop.f32.mrb[0].mxu0
        %v1614 = vpop.f32.mrb[0].mxu0
        %v1615 = vadd.f32 %v1518, %v1614
        %v1616 = vpop.f32.mrb[0].mxu0
        %1617 = vmatprep.mubr.bf16.mxu0 %v627
        %1618 = vmatmul.mubr.bf16.gmra.mrb[0].mxu0 %v595
        %v1619 = vpop.f32.mrb[0].mxu0
        %v1620 = vadd.f32 %v1523, %v1619
        %v1621 = vpop.f32.mrb[0].mxu0
        %v1622 = vpop.f32.mrb[0].mxu0
        %v1623 = vadd.f32 %v1526, %v1622
        %v1624 = vpop.f32.mrb[0].mxu0
        %1625 = vmatprep.mubr.bf16.mxu0 %v628
        %1626 = vmatmul.mubr.bf16.gmra.mrb[0].mxu0 %v596
        %v1627 = vpop.f32.mrb[0].mxu0
        %v1628 = vadd.f32 %v1531, %v1627
        %v1629 = vpop.f32.mrb[0].mxu0
        %v1630 = vpop.f32.mrb[0].mxu0
        %v1631 = vadd.f32 %v1534, %v1630
        %v1632 = vpop.f32.mrb[0].mxu0
        %1633 = vmatprep.mubr.bf16.mxu0 %v629
        %1634 = vmatmul.mubr.bf16.gmra.mrb[0].mxu0 %v597
        %v1635 = vpop.f32.mrb[0].mxu0
        %v1636 = vadd.f32 %v1539, %v1635
        %v1637 = vpop.f32.mrb[0].mxu0
        %v1638 = vpop.f32.mrb[0].mxu0
        %v1639 = vadd.f32 %v1542, %v1638
        %v1640 = vpop.f32.mrb[0].mxu0
        %1641 = vmatprep.mubr.bf16.mxu0 %v630
        %1642 = vmatmul.mubr.bf16.gmra.mrb[0].mxu0 %v598
        %v1643 = vpop.f32.mrb[0].mxu0
        %v1644 = vadd.f32 %v1547, %v1643
        %v1645 = vpop.f32.mrb[0].mxu0
        %v1646 = vpop.f32.mrb[0].mxu0
        %v1647 = vadd.f32 %v1550, %v1646
        %v1648 = vpop.f32.mrb[0].mxu0
        %1649 = vmatprep.mubr.bf16.mxu0 %v677
        %1650 = vmatmul.mubr.bf16.gmra.mrb[0].mxu0 %v673
        %v1651 = vpop.f32.mrb[0].mxu0
        %v1652 = vadd.f32 %v1555, %v1651
        %v1653 = vpop.f32.mrb[0].mxu0
        %v1654 = vpop.f32.mrb[0].mxu0
        %v1655 = vadd.f32 %v1558, %v1654
        %v1656 = vpop.f32.mrb[0].mxu0
        %1657 = vmatprep.mubr.bf16.mxu0 %v689
        %1658 = vmatmul.mubr.bf16.gmra.mrb[0].mxu0 %v685
        %v1659 = vpop.f32.mrb[0].mxu0
        %v1660 = vadd.f32 %v1563, %v1659
        %v1661 = vpop.f32.mrb[0].mxu0
        %v1662 = vpop.f32.mrb[0].mxu0
        %v1663 = vadd.f32 %v1566, %v1662
        %v1664 = vpop.f32.mrb[0].mxu0
        %1665 = vdwg.mxu0
        %1666 = vmatprep.subr.bf16.mxu0 0
        %1667 = vmatpush1.bf16.msra.mxu0 %v1198
        %1668 = vmatprep.subr.bf16.mxu0 0
        %1669 = vmatpush1.bf16.msra.mxu0 %v1199
        %1670 = vmatprep.subr.bf16.mxu0 0
        %1671 = vmatpush1.bf16.msra.mxu0 %v1200
        %1672 = vmatprep.subr.bf16.mxu0 0
        %1673 = vmatpush1.bf16.msra.mxu0 %v1201
        %1674 = vmatprep.subr.bf16.mxu0 0
        %1675 = vmatpush1.bf16.msra.mxu0 %v1202
        %1676 = vmatprep.subr.bf16.mxu0 0
        %1677 = vmatpush1.bf16.msra.mxu0 %v1203
        %1678 = vmatprep.subr.bf16.mxu0 0
        %1679 = vmatpush1.bf16.msra.mxu0 %v1204
        %1680 = vmatprep.subr.bf16.mxu0 0
        %1681 = vmatpush1.bf16.msra.mxu0 %v1205
        %1682 = vmatprep.subr.bf16.mxu0 0
        %1683 = vmatpush1.bf16.msra.mxu0 0
        %1684 = vmatprep.subr.bf16.mxu0 0
        %1685 = vmatpush1.bf16.msra.mxu0 0
        %1686 = vmatprep.subr.bf16.mxu0 0
        %1687 = vmatpush1.bf16.msra.mxu0 0
        %1688 = vmatprep.subr.bf16.mxu0 0
        %1689 = vmatpush1.bf16.msra.mxu0 0
        %1690 = vmatprep.subr.bf16.mxu0 0
        %1691 = vmatpush1.bf16.msra.mxu0 0
        %1692 = vmatprep.subr.bf16.mxu0 0
        %1693 = vmatpush1.bf16.msra.mxu0 0
        %1694 = vmatprep.subr.bf16.mxu0 0
        %1695 = vmatpush1.bf16.msra.mxu0 0
        %1696 = vmatprep.subr.bf16.mxu0 0
        %1697 = vmatpush1.bf16.msra.mxu0 0
        %1698 = vmatprep.mubr.bf16.mxu0 0
        %1699 = vmatmul.mubr.bf16.gmra.mrb[0].mxu0 %v657
        %v1700 = vpop.f32.mrb[0].mxu0
        %v1701 = vadd.f32 %v1604, %v1700
        %v1702 = vpop.f32.mrb[0].mxu0
        %v1703 = vpop.f32.mrb[0].mxu0
        %v1704 = vadd.f32 %v1607, %v1703
        %v1705 = vpop.f32.mrb[0].mxu0
        %1706 = vmatprep.mubr.bf16.mxu0 0
        %1707 = vmatmul.mubr.bf16.gmra.mrb[0].mxu0 %v658
        %v1708 = vpop.f32.mrb[0].mxu0
        %v1709 = vadd.f32 %v1612, %v1708
        %v1710 = vpop.f32.mrb[0].mxu0
        %v1711 = vpop.f32.mrb[0].mxu0
        %v1712 = vadd.f32 %v1615, %v1711
        %v1713 = vpop.f32.mrb[0].mxu0
        %1714 = vmatprep.mubr.bf16.mxu0 0
        %1715 = vmatmul.mubr.bf16.gmra.mrb[0].mxu0 %v659
        %v1716 = vpop.f32.mrb[0].mxu0
        %v1717 = vadd.f32 %v1620, %v1716
        %v1718 = vpop.f32.mrb[0].mxu0
        %v1719 = vpop.f32.mrb[0].mxu0
        %v1720 = vadd.f32 %v1623, %v1719
        %v1721 = vpop.f32.mrb[0].mxu0
        %1722 = vmatprep.mubr.bf16.mxu0 0
        %1723 = vmatmul.mubr.bf16.gmra.mrb[0].mxu0 %v660
        %v1724 = vpop.f32.mrb[0].mxu0
        %v1725 = vadd.f32 %v1628, %v1724
        %v1726 = vpop.f32.mrb[0].mxu0
        %v1727 = vpop.f32.mrb[0].mxu0
        %v1728 = vadd.f32 %v1631, %v1727
        %v1729 = vpop.f32.mrb[0].mxu0
        %1730 = vmatprep.mubr.bf16.mxu0 0
        %1731 = vmatmul.mubr.bf16.gmra.mrb[0].mxu0 %v661
        %v1732 = vpop.f32.mrb[0].mxu0
        %v1733 = vadd.f32 %v1636, %v1732
        %v1734 = vpop.f32.mrb[0].mxu0
        %v1735 = vpop.f32.mrb[0].mxu0
        %v1736 = vadd.f32 %v1639, %v1735
        %v1737 = vpop.f32.mrb[0].mxu0
        %1738 = vmatprep.mubr.bf16.mxu0 0
        %1739 = vmatmul.mubr.bf16.gmra.mrb[0].mxu0 %v662
        %v1740 = vpop.f32.mrb[0].mxu0
        %v1741 = vadd.f32 %v1644, %v1740
        %v1742 = vpop.f32.mrb[0].mxu0
        %v1743 = vpop.f32.mrb[0].mxu0
        %v1744 = vadd.f32 %v1647, %v1743
        %v1745 = vpop.f32.mrb[0].mxu0
        %1746 = vmatprep.mubr.bf16.mxu0 0
        %1747 = vmatmul.mubr.bf16.gmra.mrb[0].mxu0 %v681
        %v1748 = vpop.f32.mrb[0].mxu0
        %v1749 = vadd.f32 %v1652, %v1748
        %v1750 = vpop.f32.mrb[0].mxu0
        %v1751 = vpop.f32.mrb[0].mxu0
        %v1752 = vadd.f32 %v1655, %v1751
        %v1753 = vpop.f32.mrb[0].mxu0
        %1754 = vmatprep.mubr.bf16.mxu0 0
        %1755 = vmatmul.mubr.bf16.gmra.mrb[0].mxu0 %v693
        %v1756 = vpop.f32.mrb[0].mxu0
        %v1757 = vadd.f32 %v1660, %v1756
        %v1758 = vpop.f32.mrb[0].mxu0
        %v1759 = vpop.f32.mrb[0].mxu0
        %v1760 = vadd.f32 %v1663, %v1759
        %v1761 = vpop.f32.mrb[0].mxu0
        %1762 = vdwg.mxu0
        %v1763 = vmin.f32 %v1701, 20.0
        %v1764 = vmin.f32 %v1704, 20.0
        %v1765 = vmin.f32 %v1709, 20.0
        %v1766 = vmin.f32 %v1712, 20.0
        %v1767 = vmin.f32 %v1717, 20.0
        %v1768 = vmin.f32 %v1720, 20.0
        %v1769 = vmin.f32 %v1725, 20.0
        %v1770 = vmin.f32 %v1728, 20.0
        %v1771 = vmin.f32 %v1733, 20.0
        %v1772 = vmin.f32 %v1736, 20.0
        %v1773 = vmin.f32 %v1741, 20.0
        %v1774 = vmin.f32 %v1744, 20.0
        %v1775 = vmin.f32 %v1749, 20.0
        %v1776 = vmin.f32 %v1752, 20.0
        %v1777 = vmin.f32 %v1757, 20.0
        %v1778 = vmin.f32 %v1760, 20.0
        %v1779 = vmul.f32 %v1763, 1.442695
        %v1780 = vpow.pop %v1779
        %v1781 = vmul.f32 %v1764, 1.442695
        %v1782 = vpow.pop %v1781
        %v1783 = vmul.f32 %v1765, 1.442695
        %v1784 = vpow.pop %v1783
        %v1785 = vmul.f32 %v1766, 1.442695
        %v1786 = vpow.pop %v1785
        %v1787 = vmul.f32 %v1767, 1.442695
        %v1788 = vpow.pop %v1787
        %v1789 = vmul.f32 %v1768, 1.442695
        %v1790 = vpow.pop %v1789
        %v1791 = vmul.f32 %v1769, 1.442695
        %v1792 = vpow.pop %v1791
        %v1793 = vmul.f32 %v1770, 1.442695
        %v1794 = vpow.pop %v1793
        %v1795 = vmul.f32 %v1771, 1.442695
        %v1796 = vpow.pop %v1795
        %v1797 = vmul.f32 %v1772, 1.442695
        %v1798 = vpow.pop %v1797
        %v1799 = vmul.f32 %v1773, 1.442695
        %v1800 = vpow.pop %v1799
        %v1801 = vmul.f32 %v1774, 1.442695
        %v1802 = vpow.pop %v1801
        %v1803 = vmul.f32 %v1775, 1.442695
        %v1804 = vpow.pop %v1803
        %v1805 = vmul.f32 %v1776, 1.442695
        %v1806 = vpow.pop %v1805
        %v1807 = vmul.f32 %v1777, 1.442695
        %v1808 = vpow.pop %v1807
        %v1809 = vmul.f32 %v1778, 1.442695
        %v1810 = vpow.pop %v1809
        %v1811 = vadd.f32 %v1780, 2.0
        %v1812 = vadd.f32 %v1782, 2.0
        %v1813 = vadd.f32 %v1784, 2.0
        %v1814 = vadd.f32 %v1786, 2.0
        %v1815 = vadd.f32 %v1788, 2.0
        %v1816 = vadd.f32 %v1790, 2.0
        %v1817 = vadd.f32 %v1792, 2.0
        %v1818 = vadd.f32 %v1794, 2.0
        %v1819 = vadd.f32 %v1796, 2.0
        %v1820 = vadd.f32 %v1798, 2.0
        %v1821 = vadd.f32 %v1800, 2.0
        %v1822 = vadd.f32 %v1802, 2.0
        %v1823 = vadd.f32 %v1804, 2.0
        %v1824 = vadd.f32 %v1806, 2.0
        %v1825 = vadd.f32 %v1808, 2.0
        %v1826 = vadd.f32 %v1810, 2.0
        %v1827 = vmul.f32 %v1780, %v1811
        %v1828 = vmul.f32 %v1782, %v1812
        %v1829 = vmul.f32 %v1784, %v1813
        %v1830 = vmul.f32 %v1786, %v1814
        %v1831 = vmul.f32 %v1788, %v1815
        %v1832 = vmul.f32 %v1790, %v1816
        %v1833 = vmul.f32 %v1792, %v1817
        %v1834 = vmul.f32 %v1794, %v1818
        %v1835 = vmul.f32 %v1796, %v1819
        %v1836 = vmul.f32 %v1798, %v1820
        %v1837 = vmul.f32 %v1800, %v1821
        %v1838 = vmul.f32 %v1802, %v1822
        %v1839 = vmul.f32 %v1804, %v1823
        %v1840 = vmul.f32 %v1806, %v1824
        %v1841 = vmul.f32 %v1808, %v1825
        %v1842 = vmul.f32 %v1810, %v1826
        %v1843 = vadd.f32 %v1827, 2.0
        %v1844 = vadd.f32 %v1828, 2.0
        %v1845 = vadd.f32 %v1829, 2.0
        %v1846 = vadd.f32 %v1830, 2.0
        %v1847 = vadd.f32 %v1831, 2.0
        %v1848 = vadd.f32 %v1832, 2.0
        %v1849 = vadd.f32 %v1833, 2.0
        %v1850 = vadd.f32 %v1834, 2.0
        %v1851 = vadd.f32 %v1835, 2.0
        %v1852 = vadd.f32 %v1836, 2.0
        %v1853 = vadd.f32 %v1837, 2.0
        %v1854 = vadd.f32 %v1838, 2.0
        %v1855 = vadd.f32 %v1839, 2.0
        %v1856 = vadd.f32 %v1840, 2.0
        %v1857 = vadd.f32 %v1841, 2.0
        %v1858 = vadd.f32 %v1842, 2.0
        %v1859 = vrcp.pop %v1843
        %v1860 = vrcp.pop %v1844
        %v1861 = vrcp.pop %v1845
        %v1862 = vrcp.pop %v1846
        %v1863 = vrcp.pop %v1847
        %v1864 = vrcp.pop %v1848
        %v1865 = vrcp.pop %v1849
        %v1866 = vrcp.pop %v1850
        %v1867 = vrcp.pop %v1851
        %v1868 = vrcp.pop %v1852
        %v1869 = vrcp.pop %v1853
        %v1870 = vrcp.pop %v1854
        %v1871 = vrcp.pop %v1855
        %v1872 = vrcp.pop %v1856
        %v1873 = vrcp.pop %v1857
        %v1874 = vrcp.pop %v1858
        %v1875 = vmul.f32 %v1827, %v1859
        %v1876 = vmul.f32 %v1828, %v1860
        %v1877 = vmul.f32 %v1829, %v1861
        %v1878 = vmul.f32 %v1830, %v1862
        %v1879 = vmul.f32 %v1831, %v1863
        %v1880 = vmul.f32 %v1832, %v1864
        %v1881 = vmul.f32 %v1833, %v1865
        %v1882 = vmul.f32 %v1834, %v1866
        %v1883 = vmul.f32 %v1835, %v1867
        %v1884 = vmul.f32 %v1836, %v1868
        %v1885 = vmul.f32 %v1837, %v1869
        %v1886 = vmul.f32 %v1838, %v1870
        %v1887 = vmul.f32 %v1839, %v1871
        %v1888 = vmul.f32 %v1840, %v1872
        %v1889 = vmul.f32 %v1841, %v1873
        %v1890 = vmul.f32 %v1842, %v1874
        %v1891 = vmul.f32 %v1701, %v1875
        %v1892 = vmul.f32 %v1704, %v1876
        %v1893 = vmul.f32 %v1709, %v1877
        %v1894 = vmul.f32 %v1712, %v1878
        %v1895 = vmul.f32 %v1717, %v1879
        %v1896 = vmul.f32 %v1720, %v1880
        %v1897 = vmul.f32 %v1725, %v1881
        %v1898 = vmul.f32 %v1728, %v1882
        %v1899 = vmul.f32 %v1733, %v1883
        %v1900 = vmul.f32 %v1736, %v1884
        %v1901 = vmul.f32 %v1741, %v1885
        %v1902 = vmul.f32 %v1744, %v1886
        %v1903 = vmul.f32 %v1749, %v1887
        %v1904 = vmul.f32 %v1752, %v1888
        %v1905 = vmul.f32 %v1757, %v1889
        %v1906 = vmul.f32 %v1760, %v1890
        %1907 = vst [vmem:[%s187] sm:$0xff] %v1891
        %1908 = vst [vmem:[%s187 + $0x8] sm:$0xff] %v1892
        %1909 = vst [vmem:[%s187 + $0x10] sm:$0xff] %v1893
        %1910 = vst [vmem:[%s187 + $0x18] sm:$0xff] %v1894
        %1911 = vst [vmem:[%s187 + $0x20] sm:$0xff] %v1895
        %1912 = vst [vmem:[%s187 + $0x28] sm:$0xff] %v1896
        %1913 = vst [vmem:[%s187 + $0x30] sm:$0xff] %v1897
        %1914 = vst [vmem:[%s187 + $0x38] sm:$0xff] %v1898
        %1915 = vst [vmem:[%s187 + $0x40] sm:$0xff] %v1899
        %1916 = vst [vmem:[%s187 + $0x48] sm:$0xff] %v1900
        %1917 = vst [vmem:[%s187 + $0x50] sm:$0xff] %v1901
        %1918 = vst [vmem:[%s187 + $0x58] sm:$0xff] %v1902
        %1919 = vst [vmem:[%s187 + $0x60] sm:$0xff] %v1903
        %1920 = vst [vmem:[%s187 + $0x68] sm:$0xff] %v1904
        %1921 = vst [vmem:[%s187 + $0x70] sm:$0xff] %v1905
        %1922 = vst [vmem:[%s187 + $0x78] sm:$0xff] %v1906
        %s1923 = sand.u32 %s111, 1
        %s1924 = scalar_lea.sflag [#allocation3], %s1923
        %s1925 = sand.u32 %s111, 1
        %s1926 = smul.addr %s1925, 128
        %s1927 = scalar_lea.vmem [#allocation2], %s1926
        // Predicated region
        $region33: #{tpu_custom_call.1} parent=31 // pred_check
          %p1928 = pneg %p121
        $region34: #{tpu_custom_call.1} parent=31 // pred_check_branch
          %1930 = sbr.rel (%p1928) target = $region36
        $region35: #{tpu_custom_call.1} parent=31 // pred_region
          %s1931 = smul.u32 8, %s22
          %s1933 = ssub.s32 2048, 2048
          %1934 = vsyncadd %s1924, %s1933
          %s1935 = smul.addr %s1931, 2
          %s1936 = smul.addr %s21, 32
          %s1937 = sadd.s32 %s1935, %s1936
          %s1938 = smul.addr %s1937, 128
          %s1939 = scalar_lea.hbm %s3, %s1938
          %s1940 = sshll.u32 %s1927, 4
          %s1941 = int_to_ptr.vmem [resolvable:$true] %s1940
          %1946 = dma.vmem_to_hbm [thread:$0]  %s1941, 2048, %s1939, %s1924, 128, 128, 8
        $region36: #{tpu_custom_call.1} parent=31 // pred_fallthru
          _
      $region32: #{tpu_custom_call.1} parent=5 // pred_fallthru
        _
      %p1947 = scmp.le.s32.totalorder 2, %s12
      // Predicated region
      $region37: #{tpu_custom_call.1} parent=5 // pred_check
        %p1948 = pneg %p1947
      $region38: #{tpu_custom_call.1} parent=5 // pred_check_branch
        %1950 = sbr.rel (%p1948) target = $region40
      $region39: #{tpu_custom_call.1} parent=5 // pred_region
        %s1951 = ssub.s32 %s12, 2
        // Predicated region
        $region41: #{tpu_custom_call.1} parent=39 // pred_check
          %p1952 = pneg %p127
        $region42: #{tpu_custom_call.1} parent=39 // pred_check_branch
          %1954 = sbr.rel (%p1952) target = $region44
        $region43: #{tpu_custom_call.1} parent=39 // pred_region
          %s1955 = sand.u32 %s112, 1
          %s1956 = scalar_lea.sflag [#allocation3], %s1955
          %s1957 = sand.u32 %s112, 1
          %s1958 = smul.addr %s1957, 128
          %s1959 = scalar_lea.vmem [#allocation2], %s1958
          %1960 = dma.done %s1956, 2048
        $region44: #{tpu_custom_call.1} parent=39 // pred_fallthru
          _
      $region40: #{tpu_custom_call.1} parent=5 // pred_fallthru
        _
    $region6: #{tpu_custom_call.1} parent=1 // loop_footer
      %s16 = sadd.s32 1, %s12
    $region7: #{tpu_custom_call.1} parent=1 // loop_footer_branch
      %11 = sbr.rel target = $region3
    $region8: #{tpu_custom_call.1} parent=1 // loop_exit
      _
    %1961 = vsyncpa [#allocation3], 1
    %s1962 = scalar_lea.sflag [#allocation3], 1
    %1963 = vsyncpa %s1962, 1

</llo_original>
